<compile_context>
chip_gen: v5e
topology: v5e:2x2
jax: 0.10.0
libtpu: 0.0.40
codegen_flags: <defaults>
</compile_context>

<pallas_src>
import functools

import numpy as np
import jax
import jax.numpy as jnp
from jax import lax
from jax.experimental import pallas as pl
from jax.experimental.pallas import tpu as pltpu


# ---------------------------------------------------------------------------
# Tiling helpers
# ---------------------------------------------------------------------------
def _pick_tile(n, candidates=(8192, 4096, 2048, 1024, 512, 256, 128),
               bytes_per_col=0, vmem_budget=8 << 20):
    """Largest candidate dividing n whose double-buffered blocks fit the budget."""
    for c in candidates:
        if n % c == 0 and 2 * c * bytes_per_col <= vmem_budget:
            return c
    return n


def _attn_tiles(N, L1, L2, D, elt_bytes):
    tq = _pick_tile(L1, (1024, 512, 256, 128))
    tk = _pick_tile(L2, (512, 256, 128))
    # v7x has 2 TensorCores: keep the 'parallel' grid extent >= 2 when possible.
    if N * (L1 // tq) < 2:
        for c in (512, 256, 128):
            if c < tq and L1 % c == 0:
                tq = c
                break

    def footprint(tq_, tk_):
        # 2x-buffered q block + 2x-buffered kT & v blocks + resident f32 output
        # block + m/l scratch.
        return (2 * tq_ * D * elt_bytes + 2 * 2 * tk_ * D * elt_bytes
                + 2 * tq_ * D * 4 + 4 * tq_ * 4)

    # Budget well under v7x's 64 MiB physical / 32 MiB scoped VMEM.
    while footprint(tq, tk) > (24 << 20):
        if tk > 128 and L2 % (tk // 2) == 0:
            tk //= 2
        elif tq > 128 and L1 % (tq // 2) == 0:
            tq //= 2
        else:
            break
    return tq, tk


# ---------------------------------------------------------------------------
# 1x1 conv (channel-major):  out[Cout, P] = W[Cout, Cin] @ x[Cin, P] + b
# ---------------------------------------------------------------------------
def _cm_conv1x1_kernel(x_ref, w_ref, b_ref, o_ref):
    # x: [1, Cin, tp], w: [Cout, Cin], b: [Cout, 1] -> o: [1, Cout, tp]
    o_ref[0] = (
        jnp.dot(w_ref[...], x_ref[0], preferred_element_type=jnp.float32)
        + b_ref[...]
    )


def conv1x1_cm(x_cm, w, b):
    """x_cm: [N, Cin, HW] (channel-major), w: [Cout, Cin], b: [Cout]."""
    N, Cin, HW = x_cm.shape
    Cout = w.shape[0]
    tp = _pick_tile(HW, bytes_per_col=(Cin + Cout) * 4)
    grid = (N, HW // tp)
    return pl.pallas_call(
        _cm_conv1x1_kernel,
        out_shape=jax.ShapeDtypeStruct((N, Cout, HW), jnp.float32),
        grid=grid,
        in_specs=[
            pl.BlockSpec((1, Cin, tp), lambda bi, pi: (bi, 0, pi)),
            pl.BlockSpec((Cout, Cin), lambda bi, pi: (0, 0)),
            pl.BlockSpec((Cout, 1), lambda bi, pi: (0, 0)),
        ],
        out_specs=pl.BlockSpec((1, Cout, tp), lambda bi, pi: (bi, 0, pi)),
        compiler_params=pltpu.CompilerParams(
            dimension_semantics=("parallel", "parallel")),
    )(x_cm, w, b.reshape(Cout, 1))


# ---------------------------------------------------------------------------
# Flash-style cross attention:  softmax(q @ kT) @ v, online softmax over L2.
# Output block is VMEM-resident across the ki axis -> accumulate into o_ref.
# ---------------------------------------------------------------------------
def _flash_attn_kernel(q_ref, kT_ref, v_ref, o_ref, m_sc, l_sc):
    ki = pl.program_id(2)

    @pl.when(ki == 0)
    def _():
        m_sc[...] = jnp.full_like(m_sc, -jnp.inf)
        l_sc[...] = jnp.zeros_like(l_sc)
        o_ref[...] = jnp.zeros_like(o_ref)

    q = q_ref[0]                    # [tq, D]  (bf16; softmax_scale already in weights)
    kT = kT_ref[0]                  # [D, tk]  (bf16, pre-transposed in the wrapper)
    v = v_ref[0]                    # [tk, D]  (bf16)

    s = jnp.dot(q, kT, preferred_element_type=jnp.float32)       # [tq, tk] f32
    m_prev = m_sc[0]                                              # [tq, 1]
    m_new = jnp.maximum(m_prev, jnp.max(s, axis=-1, keepdims=True))
    alpha = jnp.exp(m_prev - m_new)
    p = jnp.exp(s - m_new)                                        # f32 softmax math
    l_sc[0] = alpha * l_sc[0] + jnp.sum(p, axis=-1, keepdims=True)
    o_ref[0] = alpha * o_ref[0] + jnp.dot(
        p.astype(v_ref.dtype), v, preferred_element_type=jnp.float32)
    m_sc[0] = m_new

    @pl.when(ki == pl.num_programs(2) - 1)
    def _():
        # Exact reciprocal (approx=False) per the review's correctness concern.
        o_ref[0] = o_ref[0] * pl.reciprocal(l_sc[0], approx=False)


def flash_attention(q, kT, v, *, mxu_dtype=jnp.bfloat16):
    """q: [N, L1, D] (pre-scaled), kT: [N, D, L2], v: [N, L2, D] -> [N, L1, D] f32."""
    N, L1, D = q.shape
    L2 = v.shape[1]
    elt_bytes = jnp.dtype(mxu_dtype).itemsize
    tq, tk = _attn_tiles(N, L1, L2, D, elt_bytes)

    # bf16 MXU operands, f32 accumulation (cast fuses into the unfold epilogue).
    q = q.astype(mxu_dtype)
    kT = kT.astype(mxu_dtype)
    v = v.astype(mxu_dtype)

    grid = (N, L1 // tq, L2 // tk)
    return pl.pallas_call(
        _flash_attn_kernel,
        out_shape=jax.ShapeDtypeStruct((N, L1, D), jnp.float32),
        grid=grid,
        in_specs=[
            pl.BlockSpec((1, tq, D), lambda bi, qi, ki: (bi, qi, 0)),
            pl.BlockSpec((1, D, tk), lambda bi, qi, ki: (bi, 0, ki)),
            pl.BlockSpec((1, tk, D), lambda bi, qi, ki: (bi, ki, 0)),
        ],
        out_specs=pl.BlockSpec((1, tq, D), lambda bi, qi, ki: (bi, qi, 0)),
        scratch_shapes=[
            pltpu.VMEM((1, tq, 1), jnp.float32),   # running max m
            pltpu.VMEM((1, tq, 1), jnp.float32),   # running sum l
        ],
        compiler_params=pltpu.CompilerParams(
            dimension_semantics=("parallel", "parallel", "arbitrary"),
            vmem_limit_bytes=32 * 1024 * 1024),
    )(q, kT, v)


# ---------------------------------------------------------------------------
# Epilogue: zi * inv_mask -> W conv -> + residual   (channel-major)
# ---------------------------------------------------------------------------
def _wconv_res_kernel(z_ref, invm_ref, w_ref, b_ref, s_ref, o_ref):
    # z: [1, Ci, tp], invm: [1, tp], w: [C, Ci], b: [C, 1], s: [1, C, tp]
    zn = z_ref[0] * invm_ref[...]                                 # overlap normalize
    y = jnp.dot(w_ref[...], zn, preferred_element_type=jnp.float32) + b_ref[...]
    o_ref[0] = s_ref[0] + y                                       # residual


def wconv_residual_cm(zi_cm, inv_mask, w, b, s_cm):
    """zi_cm: [N, Ci, HW], inv_mask: [1, HW], w: [C, Ci], b: [C], s_cm: [N, C, HW]."""
    N, Ci, HW = zi_cm.shape
    C = w.shape[0]
    tp = _pick_tile(HW, bytes_per_col=(Ci + 2 * C + 1) * 4)
    grid = (N, HW // tp)
    return pl.pallas_call(
        _wconv_res_kernel,
        out_shape=jax.ShapeDtypeStruct((N, C, HW), jnp.float32),
        grid=grid,
        in_specs=[
            pl.BlockSpec((1, Ci, tp), lambda bi, pi: (bi, 0, pi)),
            pl.BlockSpec((1, tp), lambda bi, pi: (0, pi)),     # batch-invariant mask
            pl.BlockSpec((C, Ci), lambda bi, pi: (0, 0)),
            pl.BlockSpec((C, 1), lambda bi, pi: (0, 0)),
            pl.BlockSpec((1, C, tp), lambda bi, pi: (bi, 0, pi)),
        ],
        out_specs=pl.BlockSpec((1, C, tp), lambda bi, pi: (bi, 0, pi)),
        compiler_params=pltpu.CompilerParams(
            dimension_semantics=("parallel", "parallel")),
    )(zi_cm, inv_mask, w, b.reshape(C, 1), s_cm)


# ---------------------------------------------------------------------------
# Unfold / fold glue (index shuffling, plain JAX — no scatter/gather paths)
# ---------------------------------------------------------------------------
def extract_patches_same(x, k, stride, transposed=False):
    """torch Unfold with 'same' padding (asymmetric, TF-style — matches the
    reference's same_padding).  x: [N, C, H, W].
    Returns [N, L, C*k*k] (feature order (C, kh, kw), L row-major over (oh, ow)),
    or [N, C*k*k, L] if transposed=True.  Implemented with k*k strided static
    slices (no advanced-indexing gather)."""
    N, C, H, W = x.shape
    oh = -(-H // stride)
    ow = -(-W // stride)
    pr = max(0, (oh - 1) * stride + k - H)
    pc = max(0, (ow - 1) * stride + k - W)
    pt, pleft = pr // 2, pc // 2
    pb, pright = pr - pt, pc - pleft
    xp = jnp.pad(x, ((0, 0), (0, 0), (pt, pb), (pleft, pright)))
    slabs = []
    for kh in range(k):
        for kw in range(k):
            slabs.append(lax.slice(
                xp, (0, 0, kh, kw),
                (N, C, kh + (oh - 1) * stride + 1, kw + (ow - 1) * stride + 1),
                (1, 1, stride, stride)))                        # [N, C, oh, ow]
    p = jnp.stack(slabs, axis=2).reshape(N, C * k * k, oh * ow)  # (C, kh, kw) feature order
    if transposed:
        return p                                                 # [N, C*k*k, L]
    return p.transpose(0, 2, 1)                                  # [N, L, C*k*k]


def fold_patches(p, C, H, W, k, stride, pad):
    """torch F.fold (overlap-add).  p: [N, L, C*k*k] -> [N, C, H, W].
    Implemented as k*k dilated placements (lax.pad interior padding) + dense
    adds — avoids XLA's generic scatter-add path."""
    oh = (H + 2 * pad - k) // stride + 1
    ow = (W + 2 * pad - k) // stride + 1
    N = p.shape[0]
    Hp, Wp = H + 2 * pad, W + 2 * pad
    pr = p.reshape(N, oh, ow, C, k, k)
    zero = jnp.zeros((), p.dtype)
    canvas = jnp.zeros((N, C, Hp, Wp), p.dtype)
    for kh in range(k):
        row_cfg = (kh, Hp - kh - ((oh - 1) * stride + 1), stride - 1)
        for kw in range(k):
            col_cfg = (kw, Wp - kw - ((ow - 1) * stride + 1), stride - 1)
            contrib = pr[:, :, :, :, kh, kw].transpose(0, 3, 1, 2)   # [N, C, oh, ow]
            canvas = canvas + lax.pad(
                contrib, zero, ((0, 0, 0), (0, 0, 0), row_cfg, col_cfg))
    return canvas[:, :, pad:pad + H, pad:pad + W]


def _fold_overlap_inv_mask(H, W, k, stride, pad):
    """1 / fold(unfold(ones)) — batch/channel invariant and separable over
    rows/cols, so it is computed once with numpy at trace time (a constant)."""
    def count_1d(size):
        o = (size + 2 * pad - k) // stride + 1
        cnt = np.zeros(size + 2 * pad, np.float64)
        for i in range(o):
            cnt[i * stride:i * stride + k] += 1.0
        return cnt[pad:pad + size]
    mask = count_1d(H)[:, None] * count_1d(W)[None, :]
    assert (mask > 0).all(), (
        "fold overlap mask has uncovered pixels for this ksize/stride combo "
        "(the PyTorch reference would divide by zero here too)")
    return jnp.asarray((1.0 / mask).reshape(1, H * W), jnp.float32)


# ---------------------------------------------------------------------------
# Full forward pass
# ---------------------------------------------------------------------------
def cross_attention_salsa(s, g, params, *, ksize=7, stride_1=4, stride_2=4,
                          softmax_scale=10.0, mxu_dtype=jnp.bfloat16):
    N, C, H, W = s.shape
    Ci = params["g_w"].shape[0]
    HW = H * W

    # Channel-major views (free reshapes of NCHW; no transposes).
    s_cm = s.reshape(N, C, HW)
    g_cm = g.reshape(N, C, HW)

    # Query projection (reads s).  softmax_scale folded into the conv weights:
    # unfold is a pure gather, so this is exactly q * softmax_scale without the
    # extra HBM pass over the [N, L1, D] patches.
    scale = jnp.float32(softmax_scale)
    b1 = conv1x1_cm(s_cm, params["g_w"] * scale, params["g_b"] * scale)   # [N, Ci, HW]

    # Fused theta (value) + phi (key) projections (both read g).
    w_tp = jnp.concatenate([params["theta_w"], params["phi_w"]], axis=0)
    b_tp = jnp.concatenate([params["theta_b"], params["phi_b"]], axis=0)
    b23 = conv1x1_cm(g_cm, w_tp, b_tp)                                    # [N, 2*Ci, HW]
    b2 = b23[:, :Ci]                                                      # value side
    b3 = b23[:, Ci:]                                                      # key side

    b1_img = b1.reshape(N, Ci, H, W)
    b2_img = b2.reshape(N, Ci, H, W)
    b3_img = b3.reshape(N, Ci, H, W)

    q = extract_patches_same(b1_img, ksize, stride_1)                     # [N, L1, D]
    v = extract_patches_same(b2_img, ksize, stride_2)                     # [N, L2, D]
    kT = extract_patches_same(b3_img, ksize, stride_2, transposed=True)   # [N, D, L2]

    att_v = flash_attention(q, kT, v, mxu_dtype=mxu_dtype)                # [N, L1, D] f32

    # Fold back with symmetric stride-1 'same' padding, as the reference does.
    pad_fold = (ksize - 1) // 2
    oh_f = (H + 2 * pad_fold - ksize) // stride_1 + 1
    ow_f = (W + 2 * pad_fold - ksize) // stride_1 + 1
    assert q.shape[1] == oh_f * ow_f, (
        "patch count from 'same' unfold and fold disagree for this "
        f"(H={H}, W={W}, ksize={ksize}, stride={stride_1}) combination")

    zi = fold_patches(att_v, Ci, H, W, ksize, stride_1, pad_fold)         # [N, Ci, H, W]

    inv_mask = _fold_overlap_inv_mask(H, W, ksize, stride_1, pad_fold)    # [1, HW] const

    out_cm = wconv_residual_cm(zi.reshape(N, Ci, HW), inv_mask,
                               params["W_w"], params["W_b"], s_cm)
    # TODO(synk): add_SE / conv33 branch not implemented (add_SE=False in the reference default).
    return out_cm.reshape(N, C, H, W)


# ---------------------------------------------------------------------------
if __name__ == "__main__":
    N, C, Ci, H, W = 2, 8, 4, 16, 16      # in_channels=8, inter_channels=4

    key = jax.random.PRNGKey(0)
    ks = jax.random.split(key, 10)
    params = {
        "g_w": 0.1 * jax.random.normal(ks[0], (Ci, C), jnp.float32),
        "g_b": 0.1 * jax.random.normal(ks[1], (Ci,), jnp.float32),
        "theta_w": 0.1 * jax.random.normal(ks[2], (Ci, C), jnp.float32),
        "theta_b": 0.1 * jax.random.normal(ks[3], (Ci,), jnp.float32),
        "phi_w": 0.1 * jax.random.normal(ks[4], (Ci, C), jnp.float32),
        "phi_b": 0.1 * jax.random.normal(ks[5], (Ci,), jnp.float32),
        "W_w": 0.1 * jax.random.normal(ks[6], (C, Ci), jnp.float32),
        "W_b": 0.1 * jax.random.normal(ks[7], (C,), jnp.float32),
    }
    s = jax.random.normal(ks[8], (N, C, H, W), jnp.float32)
    g = jax.random.normal(ks[9], (N, C, H, W), jnp.float32)

    fwd = jax.jit(functools.partial(cross_attention_salsa,
                                    ksize=7, stride_1=4, stride_2=4,
                                    softmax_scale=10.0))
    out = fwd(s, g, params)
    out = jax.block_until_ready(out)
    assert out.shape == (N, C, H, W), out.shape
    assert bool(jnp.all(jnp.isfinite(out)))
    print("KERNEL_OK")
</pallas_src>

<mosaic_0001>
module attributes {stable_mosaic.version = 11 : i64} {
  func.func @_cm_conv1x1_kernel(%arg0: i32, %arg1: i32, %arg2: memref<1x8x256xf32, #tpu.memory_space<vmem>>, %arg3: memref<8x8xf32, #tpu.memory_space<vmem>>, %arg4: memref<8x1xf32, #tpu.memory_space<vmem>>, %arg5: memref<1x8x256xf32, #tpu.memory_space<vmem>>) attributes {dimension_semantics = [#tpu.dimension_semantics<parallel>, #tpu.dimension_semantics<parallel>], iteration_bounds = array<i64: 2, 1>, scalar_prefetch = 0 : i64, scratch_operands = 0 : i64, tpu.core_type = #tpu.core_type<tc>, window_params = [{transform_indices = @transform_0, window_bounds = array<i64: 1, 8, 256>}, {pipeline_mode = #tpu.pipeline_mode<synchronous>, transform_indices = @transform_1, window_bounds = array<i64: 8, 8>}, {pipeline_mode = #tpu.pipeline_mode<synchronous>, transform_indices = @transform_2, window_bounds = array<i64: 8, 1>}, {transform_indices = @transform_3, window_bounds = array<i64: 1, 8, 256>}]} {
    %c0 = arith.constant 0 : index
    %c0_0 = arith.constant 0 : index
    %0 = vector.load %arg3[%c0, %c0_0] : memref<8x8xf32, #tpu.memory_space<vmem>>, vector<8x8xf32>
    %c0_1 = arith.constant 0 : index
    %c0_2 = arith.constant 0 : index
    %c0_3 = arith.constant 0 : index
    %1 = vector.load %arg2[%c0_1, %c0_2, %c0_3] : memref<1x8x256xf32, #tpu.memory_space<vmem>>, vector<1x8x256xf32>
    %2 = vector.shape_cast %1 : vector<1x8x256xf32> to vector<8x256xf32>
    %cst = arith.constant dense<0.000000e+00> : vector<8x256xf32>
    %3 = tpu.matmul %0, %2, %cst {dimension_numbers = #tpu.dot_dimension_numbers<[1], [0], [0], [1], [0, 0, 1, 1], [], []>} : vector<8x8xf32>, vector<8x256xf32>, vector<8x256xf32> -> vector<8x256xf32>
    %c0_4 = arith.constant 0 : index
    %c0_5 = arith.constant 0 : index
    %4 = vector.load %arg4[%c0_4, %c0_5] : memref<8x1xf32, #tpu.memory_space<vmem>>, vector<8x1xf32>
    %5 = vector.broadcast %4 : vector<8x1xf32> to vector<8x256xf32>
    %6 = arith.addf %3, %5 : vector<8x256xf32>
    %c0_6 = arith.constant 0 : index
    %c0_7 = arith.constant 0 : index
    %c0_8 = arith.constant 0 : index
    %7 = vector.load %arg5[%c0_6, %c0_7, %c0_8] : memref<1x8x256xf32, #tpu.memory_space<vmem>>, vector<1x8x256xf32>
    %8 = vector.shape_cast %7 : vector<1x8x256xf32> to vector<8x256xf32>
    %9 = vector.shape_cast %6 : vector<8x256xf32> to vector<1x8x256xf32>
    tpu.vector_store %arg5[%c0_6, %c0_7, %c0_8], %9 {strides = array<i32>} : memref<1x8x256xf32, #tpu.memory_space<vmem>>, vector<1x8x256xf32>,
    return
  }
  func.func @transform_0(%arg0: i32, %arg1: i32) -> (i32, i32, i32) {
    %c0_i32 = arith.constant 0 : i32
    %c0_i32_0 = arith.constant 0 : i32
    return %arg0, %c0_i32, %arg1 : i32, i32, i32
  }
  func.func @transform_1(%arg0: i32, %arg1: i32) -> (i32, i32) {
    %c0_i32 = arith.constant 0 : i32
    %c0_i32_0 = arith.constant 0 : i32
    %c0_i32_1 = arith.constant 0 : i32
    return %c0_i32, %c0_i32_0 : i32, i32
  }
  func.func @transform_2(%arg0: i32, %arg1: i32) -> (i32, i32) {
    %c0_i32 = arith.constant 0 : i32
    %c0_i32_0 = arith.constant 0 : i32
    %c0_i32_1 = arith.constant 0 : i32
    return %c0_i32, %c0_i32_0 : i32, i32
  }
  func.func @transform_3(%arg0: i32, %arg1: i32) -> (i32, i32, i32) {
    %c0_i32 = arith.constant 0 : i32
    %c0_i32_0 = arith.constant 0 : i32
    return %arg0, %c0_i32, %arg1 : i32, i32, i32
  }
}

module attributes {stable_mosaic.version = 11 : i64} {
  func.func @_cm_conv1x1_kernel(%arg0: i32, %arg1: i32, %arg2: memref<1x8x256xf32, #tpu.memory_space<vmem>>, %arg3: memref<4x8xf32, #tpu.memory_space<vmem>>, %arg4: memref<4x1xf32, #tpu.memory_space<vmem>>, %arg5: memref<1x4x256xf32, #tpu.memory_space<vmem>>) attributes {dimension_semantics = [#tpu.dimension_semantics<parallel>, #tpu.dimension_semantics<parallel>], iteration_bounds = array<i64: 2, 1>, scalar_prefetch = 0 : i64, scratch_operands = 0 : i64, tpu.core_type = #tpu.core_type<tc>, window_params = [{transform_indices = @transform_0, window_bounds = array<i64: 1, 8, 256>}, {pipeline_mode = #tpu.pipeline_mode<synchronous>, transform_indices = @transform_1, window_bounds = array<i64: 4, 8>}, {pipeline_mode = #tpu.pipeline_mode<synchronous>, transform_indices = @transform_2, window_bounds = array<i64: 4, 1>}, {transform_indices = @transform_3, window_bounds = array<i64: 1, 4, 256>}]} {
    %c0 = arith.constant 0 : index
    %c0_0 = arith.constant 0 : index
    %0 = vector.load %arg3[%c0, %c0_0] : memref<4x8xf32, #tpu.memory_space<vmem>>, vector<4x8xf32>
    %c0_1 = arith.constant 0 : index
    %c0_2 = arith.constant 0 : index
    %c0_3 = arith.constant 0 : index
    %1 = vector.load %arg2[%c0_1, %c0_2, %c0_3] : memref<1x8x256xf32, #tpu.memory_space<vmem>>, vector<1x8x256xf32>
    %2 = vector.shape_cast %1 : vector<1x8x256xf32> to vector<8x256xf32>
    %cst = arith.constant dense<0.000000e+00> : vector<4x256xf32>
    %3 = tpu.matmul %0, %2, %cst {dimension_numbers = #tpu.dot_dimension_numbers<[1], [0], [0], [1], [0, 0, 1, 1], [], []>} : vector<4x8xf32>, vector<8x256xf32>, vector<4x256xf32> -> vector<4x256xf32>
    %c0_4 = arith.constant 0 : index
    %c0_5 = arith.constant 0 : index
    %4 = vector.load %arg4[%c0_4, %c0_5] : memref<4x1xf32, #tpu.memory_space<vmem>>, vector<4x1xf32>
    %5 = vector.broadcast %4 : vector<4x1xf32> to vector<4x256xf32>
    %6 = arith.addf %3, %5 : vector<4x256xf32>
    %c0_6 = arith.constant 0 : index
    %c0_7 = arith.constant 0 : index
    %c0_8 = arith.constant 0 : index
    %7 = vector.load %arg5[%c0_6, %c0_7, %c0_8] : memref<1x4x256xf32, #tpu.memory_space<vmem>>, vector<1x4x256xf32>
    %8 = vector.shape_cast %7 : vector<1x4x256xf32> to vector<4x256xf32>
    %9 = vector.shape_cast %6 : vector<4x256xf32> to vector<1x4x256xf32>
    tpu.vector_store %arg5[%c0_6, %c0_7, %c0_8], %9 {strides = array<i32>} : memref<1x4x256xf32, #tpu.memory_space<vmem>>, vector<1x4x256xf32>,
    return
  }
  func.func @transform_0(%arg0: i32, %arg1: i32) -> (i32, i32, i32) {
    %c0_i32 = arith.constant 0 : i32
    %c0_i32_0 = arith.constant 0 : i32
    return %arg0, %c0_i32, %arg1 : i32, i32, i32
  }
  func.func @transform_1(%arg0: i32, %arg1: i32) -> (i32, i32) {
    %c0_i32 = arith.constant 0 : i32
    %c0_i32_0 = arith.constant 0 : i32
    %c0_i32_1 = arith.constant 0 : i32
    return %c0_i32, %c0_i32_0 : i32, i32
  }
  func.func @transform_2(%arg0: i32, %arg1: i32) -> (i32, i32) {
    %c0_i32 = arith.constant 0 : i32
    %c0_i32_0 = arith.constant 0 : i32
    %c0_i32_1 = arith.constant 0 : i32
    return %c0_i32, %c0_i32_0 : i32, i32
  }
  func.func @transform_3(%arg0: i32, %arg1: i32) -> (i32, i32, i32) {
    %c0_i32 = arith.constant 0 : i32
    %c0_i32_0 = arith.constant 0 : i32
    return %arg0, %c0_i32, %arg1 : i32, i32, i32
  }
}

module attributes {stable_mosaic.version = 11 : i64} {
  func.func @_flash_attn_kernel(%arg0: i32, %arg1: i32, %arg2: i32, %arg3: memref<1x16x196xbf16, #tpu.memory_space<vmem>>, %arg4: memref<1x196x16xbf16, #tpu.memory_space<vmem>>, %arg5: memref<1x16x196xbf16, #tpu.memory_space<vmem>>, %arg6: memref<1x16x196xf32, #tpu.memory_space<vmem>>, %arg7: memref<1x16x1xf32, #tpu.memory_space<vmem>>, %arg8: memref<1x16x1xf32, #tpu.memory_space<vmem>>) attributes {dimension_semantics = [#tpu.dimension_semantics<parallel>, #tpu.dimension_semantics<parallel>, #tpu.dimension_semantics<arbitrary>], iteration_bounds = array<i64: 2, 1, 1>, scalar_prefetch = 0 : i64, scratch_operands = 2 : i64, tpu.core_type = #tpu.core_type<tc>, window_params = [{transform_indices = @transform_0, window_bounds = array<i64: 1, 16, 196>}, {transform_indices = @transform_1, window_bounds = array<i64: 1, 196, 16>}, {transform_indices = @transform_2, window_bounds = array<i64: 1, 16, 196>}, {transform_indices = @transform_3, window_bounds = array<i64: 1, 16, 196>}]} {
    %c0_i32 = arith.constant 0 : i32
    %0 = arith.cmpi eq, %arg2, %c0_i32 : i32
    %1 = arith.extui %0 : i1 to i32
    %c0_i32_0 = arith.constant 0 : i32
    %2 = arith.cmpi ne, %1, %c0_i32_0 : i32
    scf.if %2 {
      %cst_32 = arith.constant 0xFF800000 : f32
      %45 = vector.broadcast %cst_32 : f32 to vector<1x16x1xf32>
      %c0_33 = arith.constant 0 : index
      %c0_34 = arith.constant 0 : index
      %c0_35 = arith.constant 0 : index
      %46 = vector.load %arg7[%c0_33, %c0_34, %c0_35] : memref<1x16x1xf32, #tpu.memory_space<vmem>>, vector<1x16x1xf32>
      tpu.vector_store %arg7[%c0_33, %c0_34, %c0_35], %45 {strides = array<i32>} : memref<1x16x1xf32, #tpu.memory_space<vmem>>, vector<1x16x1xf32>,
      %cst_36 = arith.constant 0.000000e+00 : f32
      %47 = vector.broadcast %cst_36 : f32 to vector<1x16x1xf32>
      %c0_37 = arith.constant 0 : index
      %c0_38 = arith.constant 0 : index
      %c0_39 = arith.constant 0 : index
      %48 = vector.load %arg8[%c0_37, %c0_38, %c0_39] : memref<1x16x1xf32, #tpu.memory_space<vmem>>, vector<1x16x1xf32>
      tpu.vector_store %arg8[%c0_37, %c0_38, %c0_39], %47 {strides = array<i32>} : memref<1x16x1xf32, #tpu.memory_space<vmem>>, vector<1x16x1xf32>,
      %cst_40 = arith.constant 0.000000e+00 : f32
      %49 = vector.broadcast %cst_40 : f32 to vector<1x16x196xf32>
      %c0_41 = arith.constant 0 : index
      %c0_42 = arith.constant 0 : index
      %c0_43 = arith.constant 0 : index
      %50 = vector.load %arg6[%c0_41, %c0_42, %c0_43] : memref<1x16x196xf32, #tpu.memory_space<vmem>>, vector<1x16x196xf32>
      tpu.vector_store %arg6[%c0_41, %c0_42, %c0_43], %49 {strides = array<i32>} : memref<1x16x196xf32, #tpu.memory_space<vmem>>, vector<1x16x196xf32>,
    } else {
    }
    %c0 = arith.constant 0 : index
    %c0_1 = arith.constant 0 : index
    %c0_2 = arith.constant 0 : index
    %3 = vector.load %arg3[%c0, %c0_1, %c0_2] : memref<1x16x196xbf16, #tpu.memory_space<vmem>>, vector<1x16x196xbf16>
    %4 = vector.shape_cast %3 : vector<1x16x196xbf16> to vector<16x196xbf16>
    %c0_3 = arith.constant 0 : index
    %c0_4 = arith.constant 0 : index
    %c0_5 = arith.constant 0 : index
    %5 = vector.load %arg4[%c0_3, %c0_4, %c0_5] : memref<1x196x16xbf16, #tpu.memory_space<vmem>>, vector<1x196x16xbf16>
    %6 = vector.shape_cast %5 : vector<1x196x16xbf16> to vector<196x16xbf16>
    %c0_6 = arith.constant 0 : index
    %c0_7 = arith.constant 0 : index
    %c0_8 = arith.constant 0 : index
    %7 = vector.load %arg5[%c0_6, %c0_7, %c0_8] : memref<1x16x196xbf16, #tpu.memory_space<vmem>>, vector<1x16x196xbf16>
    %8 = vector.shape_cast %7 : vector<1x16x196xbf16> to vector<16x196xbf16>
    %cst = arith.constant dense<0.000000e+00> : vector<16x16xf32>
    %9 = tpu.matmul %4, %6, %cst {dimension_numbers = #tpu.dot_dimension_numbers<[1], [0], [0], [1], [0, 0, 1, 1], [], []>} : vector<16x196xbf16>, vector<196x16xbf16>, vector<16x16xf32> -> vector<16x16xf32>
    %c0_9 = arith.constant 0 : index
    %c0_10 = arith.constant 0 : index
    %c0_11 = arith.constant 0 : index
    %10 = vector.load %arg7[%c0_9, %c0_10, %c0_11] : memref<1x16x1xf32, #tpu.memory_space<vmem>>, vector<1x16x1xf32>
    %11 = vector.shape_cast %10 : vector<1x16x1xf32> to vector<16x1xf32>
    %cst_12 = arith.constant dense<0xFF800000> : vector<16xf32>
    %12 = vector.multi_reduction <maximumf>, %9, %cst_12 [1] : vector<16x16xf32> to vector<16xf32>
    %13 = vector.shape_cast %12 : vector<16xf32> to vector<16x1xf32>
    %14 = arith.maximumf %11, %13 : vector<16x1xf32>
    %15 = arith.subf %11, %14 : vector<16x1xf32>
    %16 = math.exp %15 : vector<16x1xf32>
    %17 = vector.broadcast %14 : vector<16x1xf32> to vector<16x16xf32>
    %18 = arith.subf %9, %17 : vector<16x16xf32>
    %19 = math.exp %18 : vector<16x16xf32>
    %c0_13 = arith.constant 0 : index
    %c0_14 = arith.constant 0 : index
    %c0_15 = arith.constant 0 : index
    %20 = vector.load %arg8[%c0_13, %c0_14, %c0_15] : memref<1x16x1xf32, #tpu.memory_space<vmem>>, vector<1x16x1xf32>
    %21 = vector.shape_cast %20 : vector<1x16x1xf32> to vector<16x1xf32>
    %22 = arith.mulf %16, %21 : vector<16x1xf32>
    %cst_16 = arith.constant dense<0.000000e+00> : vector<16xf32>
    %23 = vector.multi_reduction <add>, %19, %cst_16 [1] : vector<16x16xf32> to vector<16xf32>
    %24 = vector.shape_cast %23 : vector<16xf32> to vector<16x1xf32>
    %25 = arith.addf %22, %24 : vector<16x1xf32>
    %c0_17 = arith.constant 0 : index
    %c0_18 = arith.constant 0 : index
    %c0_19 = arith.constant 0 : index
    %26 = vector.load %arg8[%c0_17, %c0_18, %c0_19] : memref<1x16x1xf32, #tpu.memory_space<vmem>>, vector<1x16x1xf32>
    %27 = vector.shape_cast %26 : vector<1x16x1xf32> to vector<16x1xf32>
    %28 = vector.shape_cast %25 : vector<16x1xf32> to vector<1x16x1xf32>
    tpu.vector_store %arg8[%c0_17, %c0_18, %c0_19], %28 {strides = array<i32>} : memref<1x16x1xf32, #tpu.memory_space<vmem>>, vector<1x16x1xf32>,
    %c0_20 = arith.constant 0 : index
    %c0_21 = arith.constant 0 : index
    %c0_22 = arith.constant 0 : index
    %29 = vector.load %arg6[%c0_20, %c0_21, %c0_22] : memref<1x16x196xf32, #tpu.memory_space<vmem>>, vector<1x16x196xf32>
    %30 = vector.shape_cast %29 : vector<1x16x196xf32> to vector<16x196xf32>
    %31 = vector.broadcast %16 : vector<16x1xf32> to vector<16x196xf32>
    %32 = arith.mulf %31, %30 : vector<16x196xf32>
    %33 = arith.truncf %19 : vector<16x16xf32> to vector<16x16xbf16>
    %cst_23 = arith.constant dense<0.000000e+00> : vector<16x196xf32>
    %34 = tpu.matmul %33, %8, %cst_23 {dimension_numbers = #tpu.dot_dimension_numbers<[1], [0], [0], [1], [0, 0, 1, 1], [], []>} : vector<16x16xbf16>, vector<16x196xbf16>, vector<16x196xf32> -> vector<16x196xf32>
    %35 = arith.addf %32, %34 : vector<16x196xf32>
    %c0_24 = arith.constant 0 : index
    %c0_25 = arith.constant 0 : index
    %c0_26 = arith.constant 0 : index
    %36 = vector.load %arg6[%c0_24, %c0_25, %c0_26] : memref<1x16x196xf32, #tpu.memory_space<vmem>>, vector<1x16x196xf32>
    %37 = vector.shape_cast %36 : vector<1x16x196xf32> to vector<16x196xf32>
    %38 = vector.shape_cast %35 : vector<16x196xf32> to vector<1x16x196xf32>
    tpu.vector_store %arg6[%c0_24, %c0_25, %c0_26], %38 {strides = array<i32>} : memref<1x16x196xf32, #tpu.memory_space<vmem>>, vector<1x16x196xf32>,
    %c0_27 = arith.constant 0 : index
    %c0_28 = arith.constant 0 : index
    %c0_29 = arith.constant 0 : index
    %39 = vector.load %arg7[%c0_27, %c0_28, %c0_29] : memref<1x16x1xf32, #tpu.memory_space<vmem>>, vector<1x16x1xf32>
    %40 = vector.shape_cast %39 : vector<1x16x1xf32> to vector<16x1xf32>
    %41 = vector.shape_cast %14 : vector<16x1xf32> to vector<1x16x1xf32>
    tpu.vector_store %arg7[%c0_27, %c0_28, %c0_29], %41 {strides = array<i32>} : memref<1x16x1xf32, #tpu.memory_space<vmem>>, vector<1x16x1xf32>,
    %c0_i32_30 = arith.constant 0 : i32
    %42 = arith.cmpi eq, %arg2, %c0_i32_30 : i32
    %43 = arith.extui %42 : i1 to i32
    %c0_i32_31 = arith.constant 0 : i32
    %44 = arith.cmpi ne, %43, %c0_i32_31 : i32
    scf.if %44 {
      %c0_32 = arith.constant 0 : index
      %c0_33 = arith.constant 0 : index
      %c0_34 = arith.constant 0 : index
      %45 = vector.load %arg6[%c0_32, %c0_33, %c0_34] : memref<1x16x196xf32, #tpu.memory_space<vmem>>, vector<1x16x196xf32>
      %46 = vector.shape_cast %45 : vector<1x16x196xf32> to vector<16x196xf32>
      %c0_35 = arith.constant 0 : index
      %c0_36 = arith.constant 0 : index
      %c0_37 = arith.constant 0 : index
      %47 = vector.load %arg8[%c0_35, %c0_36, %c0_37] : memref<1x16x1xf32, #tpu.memory_space<vmem>>, vector<1x16x1xf32>
      %48 = vector.shape_cast %47 : vector<1x16x1xf32> to vector<16x1xf32>
      %49 = tpu.reciprocal %48 : vector<16x1xf32> -> vector<16x1xf32>
      %50 = vector.broadcast %49 : vector<16x1xf32> to vector<16x196xf32>
      %51 = arith.mulf %46, %50 : vector<16x196xf32>
      %c0_38 = arith.constant 0 : index
      %c0_39 = arith.constant 0 : index
      %c0_40 = arith.constant 0 : index
      %52 = vector.load %arg6[%c0_38, %c0_39, %c0_40] : memref<1x16x196xf32, #tpu.memory_space<vmem>>, vector<1x16x196xf32>
      %53 = vector.shape_cast %52 : vector<1x16x196xf32> to vector<16x196xf32>
      %54 = vector.shape_cast %51 : vector<16x196xf32> to vector<1x16x196xf32>
      tpu.vector_store %arg6[%c0_38, %c0_39, %c0_40], %54 {strides = array<i32>} : memref<1x16x196xf32, #tpu.memory_space<vmem>>, vector<1x16x196xf32>,
    } else {
    }
    return
  }
  func.func @transform_0(%arg0: i32, %arg1: i32, %arg2: i32) -> (i32, i32, i32) {
    %c0_i32 = arith.constant 0 : i32
    %c0_i32_0 = arith.constant 0 : i32
    return %arg0, %arg1, %c0_i32 : i32, i32, i32
  }
  func.func @transform_1(%arg0: i32, %arg1: i32, %arg2: i32) -> (i32, i32, i32) {
    %c0_i32 = arith.constant 0 : i32
    %c0_i32_0 = arith.constant 0 : i32
    return %arg0, %c0_i32, %arg2 : i32, i32, i32
  }
  func.func @transform_2(%arg0: i32, %arg1: i32, %arg2: i32) -> (i32, i32, i32) {
    %c0_i32 = arith.constant 0 : i32
    %c0_i32_0 = arith.constant 0 : i32
    return %arg0, %arg2, %c0_i32 : i32, i32, i32
  }
  func.func @transform_3(%arg0: i32, %arg1: i32, %arg2: i32) -> (i32, i32, i32) {
    %c0_i32 = arith.constant 0 : i32
    %c0_i32_0 = arith.constant 0 : i32
    return %arg0, %arg1, %c0_i32 : i32, i32, i32
  }
}

module attributes {stable_mosaic.version = 11 : i64} {
  func.func @_wconv_res_kernel(%arg0: i32, %arg1: i32, %arg2: memref<1x4x256xf32, #tpu.memory_space<vmem>>, %arg3: memref<1x256xf32, #tpu.memory_space<vmem>>, %arg4: memref<8x4xf32, #tpu.memory_space<vmem>>, %arg5: memref<8x1xf32, #tpu.memory_space<vmem>>, %arg6: memref<1x8x256xf32, #tpu.memory_space<vmem>>, %arg7: memref<1x8x256xf32, #tpu.memory_space<vmem>>) attributes {dimension_semantics = [#tpu.dimension_semantics<parallel>, #tpu.dimension_semantics<parallel>], iteration_bounds = array<i64: 2, 1>, scalar_prefetch = 0 : i64, scratch_operands = 0 : i64, tpu.core_type = #tpu.core_type<tc>, window_params = [{transform_indices = @transform_0, window_bounds = array<i64: 1, 4, 256>}, {transform_indices = @transform_1, window_bounds = array<i64: 1, 256>}, {pipeline_mode = #tpu.pipeline_mode<synchronous>, transform_indices = @transform_2, window_bounds = array<i64: 8, 4>}, {pipeline_mode = #tpu.pipeline_mode<synchronous>, transform_indices = @transform_3, window_bounds = array<i64: 8, 1>}, {transform_indices = @transform_4, window_bounds = array<i64: 1, 8, 256>}, {transform_indices = @transform_5, window_bounds = array<i64: 1, 8, 256>}]} {
    %c0 = arith.constant 0 : index
    %c0_0 = arith.constant 0 : index
    %c0_1 = arith.constant 0 : index
    %0 = vector.load %arg2[%c0, %c0_0, %c0_1] : memref<1x4x256xf32, #tpu.memory_space<vmem>>, vector<1x4x256xf32>
    %1 = vector.shape_cast %0 : vector<1x4x256xf32> to vector<4x256xf32>
    %c0_2 = arith.constant 0 : index
    %c0_3 = arith.constant 0 : index
    %2 = vector.load %arg3[%c0_2, %c0_3] : memref<1x256xf32, #tpu.memory_space<vmem>>, vector<1x256xf32>
    %3 = vector.broadcast %2 : vector<1x256xf32> to vector<4x256xf32>
    %4 = arith.mulf %1, %3 : vector<4x256xf32>
    %c0_4 = arith.constant 0 : index
    %c0_5 = arith.constant 0 : index
    %5 = vector.load %arg4[%c0_4, %c0_5] : memref<8x4xf32, #tpu.memory_space<vmem>>, vector<8x4xf32>
    %cst = arith.constant dense<0.000000e+00> : vector<8x256xf32>
    %6 = tpu.matmul %5, %4, %cst {dimension_numbers = #tpu.dot_dimension_numbers<[1], [0], [0], [1], [0, 0, 1, 1], [], []>} : vector<8x4xf32>, vector<4x256xf32>, vector<8x256xf32> -> vector<8x256xf32>
    %c0_6 = arith.constant 0 : index
    %c0_7 = arith.constant 0 : index
    %7 = vector.load %arg5[%c0_6, %c0_7] : memref<8x1xf32, #tpu.memory_space<vmem>>, vector<8x1xf32>
    %8 = vector.broadcast %7 : vector<8x1xf32> to vector<8x256xf32>
    %9 = arith.addf %6, %8 : vector<8x256xf32>
    %c0_8 = arith.constant 0 : index
    %c0_9 = arith.constant 0 : index
    %c0_10 = arith.constant 0 : index
    %10 = vector.load %arg6[%c0_8, %c0_9, %c0_10] : memref<1x8x256xf32, #tpu.memory_space<vmem>>, vector<1x8x256xf32>
    %11 = vector.shape_cast %10 : vector<1x8x256xf32> to vector<8x256xf32>
    %12 = arith.addf %11, %9 : vector<8x256xf32>
    %c0_11 = arith.constant 0 : index
    %c0_12 = arith.constant 0 : index
    %c0_13 = arith.constant 0 : index
    %13 = vector.load %arg7[%c0_11, %c0_12, %c0_13] : memref<1x8x256xf32, #tpu.memory_space<vmem>>, vector<1x8x256xf32>
    %14 = vector.shape_cast %13 : vector<1x8x256xf32> to vector<8x256xf32>
    %15 = vector.shape_cast %12 : vector<8x256xf32> to vector<1x8x256xf32>
    tpu.vector_store %arg7[%c0_11, %c0_12, %c0_13], %15 {strides = array<i32>} : memref<1x8x256xf32, #tpu.memory_space<vmem>>, vector<1x8x256xf32>,
    return
  }
  func.func @transform_0(%arg0: i32, %arg1: i32) -> (i32, i32, i32) {
    %c0_i32 = arith.constant 0 : i32
    %c0_i32_0 = arith.constant 0 : i32
    return %arg0, %c0_i32, %arg1 : i32, i32, i32
  }
  func.func @transform_1(%arg0: i32, %arg1: i32) -> (i32, i32) {
    %c0_i32 = arith.constant 0 : i32
    %c0_i32_0 = arith.constant 0 : i32
    return %c0_i32, %arg1 : i32, i32
  }
  func.func @transform_2(%arg0: i32, %arg1: i32) -> (i32, i32) {
    %c0_i32 = arith.constant 0 : i32
    %c0_i32_0 = arith.constant 0 : i32
    %c0_i32_1 = arith.constant 0 : i32
    return %c0_i32, %c0_i32_0 : i32, i32
  }
  func.func @transform_3(%arg0: i32, %arg1: i32) -> (i32, i32) {
    %c0_i32 = arith.constant 0 : i32
    %c0_i32_0 = arith.constant 0 : i32
    %c0_i32_1 = arith.constant 0 : i32
    return %c0_i32, %c0_i32_0 : i32, i32
  }
  func.func @transform_4(%arg0: i32, %arg1: i32) -> (i32, i32, i32) {
    %c0_i32 = arith.constant 0 : i32
    %c0_i32_0 = arith.constant 0 : i32
    return %arg0, %c0_i32, %arg1 : i32, i32, i32
  }
  func.func @transform_5(%arg0: i32, %arg1: i32) -> (i32, i32, i32) {
    %c0_i32 = arith.constant 0 : i32
    %c0_i32_0 = arith.constant 0 : i32
    return %arg0, %c0_i32, %arg1 : i32, i32, i32
  }
}

</mosaic_0001>

<llo_original>
// kernel: cross_attention_salsa.5
$region0: #{cross_attention_salsa.5}
  #allocation0 [shape = 'u32[]', space=smem, size = 0x4, offset = 0x4, fixed_abs, tag = 'smem constant byte address 0x4 - core index']
  #allocation1 [shape = 'u32[72,128]{1,0:T(1,128)}', space=vmem, size = 0x9000, scoped, tag = 'internal scratch']
  %s0 = inlined_call_operand.vmem [shape: f32[2,8,256], index: 0, kind: input, shape index: {}]
  %s1 = inlined_call_operand.vmem [shape: f32[8,8], index: 1, kind: input, shape index: {}]
  %s2 = inlined_call_operand.vmem [shape: f32[8,1], index: 2, kind: input, shape index: {}]
  %s3 = inlined_call_operand.vmem [shape: f32[2,8,256], index: 3, kind: output, shape index: {}]
  %s4 = sld [smem:[#allocation0]]
  $region45: #{cross_attention_salsa.5} parent=0
    _
  %s6 = ssub.s32 1, %s4
  %s7 = scalar_select 0, %s6, %s4
  loop: start=0, step=1, limit=4
  $region2: #{cross_attention_salsa.5} parent=0 // loop_pre_header
    _
  $region3: #{cross_attention_salsa.5} parent=0 // loop_header
    %s9 = sphi 0, %s13
    %p10 = scmp.ge.s32.totalorder %s9, 4
    %s16 = sphi 0, %s28
    %s17 = sphi 0, %s24
    %s18 = sphi 0, %s16
    %s19 = sphi 0, %s17
    %s20 = sphi 0, %s18
    %s21 = sphi 0, %s19
    %s33 = sphi 0, %s35
    %s36 = sphi 0, %s33
    %s37 = sphi 0, %s36
    %s53 = sphi 0, %s37
    %s57 = sphi 0, %s57
    %s59 = sphi 0, %s57
    %s60 = sphi 0, %s59
    %s74 = sphi 0, %s60
    %s78 = sphi 0, %s78
    %s80 = sphi 0, %s78
    %s81 = sphi 0, %s80
    %s95 = sphi 0, %s81
    %s103 = sphi 0, %s105
    %s106 = sphi 0, %s103
    %s107 = sphi 0, %s106
    %s123 = sphi 0, %s107
  $region4: #{cross_attention_salsa.5} parent=0 // loop_header_branch
    %12 = sbr.rel (%p10) target = $region8
  $region5: #{cross_attention_salsa.5} parent=0 // loop_body
    %s14 = ssub.s32 %s9, 1
    %s15 = ssub.s32 %s9, 2
    %s22 = sadd.s32 1, %s17
    %p23 = scmp.ge.s32.totalorder %s22, 1
    %s24 = scalar_select %p23, 0, %s22
    %s25 = sadd.s32 1, %s16
    %s26 = scalar_select %p23, %s25, %s16
    %p27 = scmp.ge.s32.totalorder %s26, 2
    %s28 = scalar_select %p27, 0, %s26
    %s29 = ssub.s32 %s16, %s28
    %s30 = ssub.s32 %s17, %s24
    %s31 = sor.u32 %s29, %s30
    %p32 = scmp.eq.s32.totalorder %s31, 0
    %s34 = sadd.s32 %s33, 1
    %s35 = scalar_select %p32, %s33, %s34
    %p38 = pneg %p32
    %p39 = scmp.eq.s32.totalorder %s9, 1
    %p40 = por %p38, %p39
    %p41 = scmp.ne.s32.totalorder %s33, %s36
    %p42 = scmp.eq.s32.totalorder %s9, 0
    %p43 = por %p41, %p42
    %p44 = scmp.ne.s32.totalorder %s33, %s36
    %p45 = scmp.eq.s32.totalorder %s14, 1
    %p46 = por %p44, %p45
    %p47 = scmp.ne.s32.totalorder %s36, %s37
    %p48 = scmp.eq.s32.totalorder %s14, 0
    %p49 = por %p47, %p48
    %p50 = scmp.ne.s32.totalorder %s36, %s37
    %p51 = scmp.eq.s32.totalorder %s15, 1
    %p52 = por %p50, %p51
    %p54 = scmp.ne.s32.totalorder %s37, %s53
    %p55 = scmp.eq.s32.totalorder %s15, 0
    %p56 = por %p54, %p55
    %s58 = sadd.s32 %s57, 1
    %p61 = scmp.eq.s32.totalorder %s9, 1
    %p62 = scmp.ne.s32.totalorder %s57, %s59
    %p63 = scmp.eq.s32.totalorder %s9, 0
    %p64 = por %p62, %p63
    %p65 = scmp.ne.s32.totalorder %s57, %s59
    %p66 = scmp.eq.s32.totalorder %s14, 1
    %p67 = por %p65, %p66
    %p68 = scmp.ne.s32.totalorder %s59, %s60
    %p69 = scmp.eq.s32.totalorder %s14, 0
    %p70 = por %p68, %p69
    %p71 = scmp.ne.s32.totalorder %s59, %s60
    %p72 = scmp.eq.s32.totalorder %s15, 1
    %p73 = por %p71, %p72
    %p75 = scmp.ne.s32.totalorder %s60, %s74
    %p76 = scmp.eq.s32.totalorder %s15, 0
    %p77 = por %p75, %p76
    %s79 = sadd.s32 %s78, 1
    %p82 = scmp.eq.s32.totalorder %s9, 1
    %p83 = scmp.ne.s32.totalorder %s78, %s80
    %p84 = scmp.eq.s32.totalorder %s9, 0
    %p85 = por %p83, %p84
    %p86 = scmp.ne.s32.totalorder %s78, %s80
    %p87 = scmp.eq.s32.totalorder %s14, 1
    %p88 = por %p86, %p87
    %p89 = scmp.ne.s32.totalorder %s80, %s81
    %p90 = scmp.eq.s32.totalorder %s14, 0
    %p91 = por %p89, %p90
    %p92 = scmp.ne.s32.totalorder %s80, %s81
    %p93 = scmp.eq.s32.totalorder %s15, 1
    %p94 = por %p92, %p93
    %p96 = scmp.ne.s32.totalorder %s81, %s95
    %p97 = scmp.eq.s32.totalorder %s15, 0
    %p98 = por %p96, %p97
    %s99 = ssub.s32 %s16, %s28
    %s100 = ssub.s32 %s17, %s24
    %s101 = sor.u32 %s99, %s100
    %p102 = scmp.eq.s32.totalorder %s101, 0
    %s104 = sadd.s32 %s103, 1
    %s105 = scalar_select %p102, %s103, %s104
    %p108 = pneg %p102
    %p109 = scmp.eq.s32.totalorder %s9, 1
    %p110 = por %p108, %p109
    %p111 = scmp.ne.s32.totalorder %s103, %s106
    %p112 = scmp.eq.s32.totalorder %s9, 0
    %p113 = por %p111, %p112
    %p114 = scmp.ne.s32.totalorder %s103, %s106
    %p115 = scmp.eq.s32.totalorder %s14, 1
    %p116 = por %p114, %p115
    %p117 = scmp.ne.s32.totalorder %s106, %s107
    %p118 = scmp.eq.s32.totalorder %s14, 0
    %p119 = por %p117, %p118
    %p120 = scmp.ne.s32.totalorder %s106, %s107
    %p121 = scmp.eq.s32.totalorder %s15, 1
    %p122 = por %p120, %p121
    %p124 = scmp.ne.s32.totalorder %s107, %s123
    %p125 = scmp.eq.s32.totalorder %s15, 0
    %p126 = por %p124, %p125
    %p127 = scmp.le.s32.totalorder 1, %s9
    %p128 = scmp.lt.s32.totalorder %s9, 3
    %p129 = pnand %p127, %p128
    %p130 = pneg %p129
    // Predicated region
    $region9: #{cross_attention_salsa.5} parent=5 // pred_check
      _
    $region10: #{cross_attention_salsa.5} parent=5 // pred_check_branch
      %132 = sbr.rel (%p129) target = $region12
    $region11: #{cross_attention_salsa.5} parent=5 // pred_region
      %s133 = ssub.s32 %s9, 1
      // Predicated region
      $region13: #{cross_attention_salsa.5} parent=11 // pred_check
        %p134 = pneg %p70
      $region14: #{cross_attention_salsa.5} parent=11 // pred_check_branch
        %136 = sbr.rel (%p134) target = $region16
      $region15: #{cross_attention_salsa.5} parent=11 // pred_region
        _
      $region16: #{cross_attention_salsa.5} parent=11 // pred_fallthru
        _
      // Predicated region
      $region17: #{cross_attention_salsa.5} parent=11 // pred_check
        %p137 = pneg %p91
      $region18: #{cross_attention_salsa.5} parent=11 // pred_check_branch
        %139 = sbr.rel (%p137) target = $region20
      $region19: #{cross_attention_salsa.5} parent=11 // pred_region
        _
      $region20: #{cross_attention_salsa.5} parent=11 // pred_fallthru
        _
    $region12: #{cross_attention_salsa.5} parent=5 // pred_fallthru
      _
    %p140 = scmp.lt.s32.totalorder %s9, 2
    // Predicated region
    $region21: #{cross_attention_salsa.5} parent=5 // pred_check
      %p141 = pneg %p140
    $region22: #{cross_attention_salsa.5} parent=5 // pred_check_branch
      %143 = sbr.rel (%p141) target = $region24
    $region23: #{cross_attention_salsa.5} parent=5 // pred_region
      // Predicated region
      $region25: #{cross_attention_salsa.5} parent=23 // pred_check
        %p144 = pneg %p43
      $region26: #{cross_attention_salsa.5} parent=23 // pred_check_branch
        %146 = sbr.rel (%p144) target = $region28
      $region27: #{cross_attention_salsa.5} parent=23 // pred_region
        %s147 = smul.u32 2, %s17
        %p148 = scmp.lt.s32.totalorder %s16, 1
        %s149 = scalar_select %p148, %s16, 1
        %p150 = scmp.lt.s32.totalorder %s147, 1
        %s151 = scalar_select %p150, %s147, 1
        %s152 = smul.addr %s149, 2
        %s153 = sadd.s32 %s151, %s152
        %s154 = smul.addr %s153, 8
        %s155 = scalar_lea.vmem %s0, %s154
        %s156 = smul.u32 2, %s17
      $region28: #{cross_attention_salsa.5} parent=23 // pred_fallthru
        _
    $region24: #{cross_attention_salsa.5} parent=5 // pred_fallthru
      _
    %p157 = scmp.le.s32.totalorder 1, %s9
    %p158 = scmp.lt.s32.totalorder %s9, 3
    %p159 = pnand %p157, %p158
    %p160 = pneg %p159
    // Predicated region
    $region29: #{cross_attention_salsa.5} parent=5 // pred_check
      _
    $region30: #{cross_attention_salsa.5} parent=5 // pred_check_branch
      %162 = sbr.rel (%p159) target = $region32
    $region31: #{cross_attention_salsa.5} parent=5 // pred_region
      %s163 = ssub.s32 %s9, 1
      %s164 = smul.u32 2, %s19
      %p165 = scmp.lt.s32.totalorder %s18, 1
      %s166 = scalar_select %p165, %s18, 1
      %p167 = scmp.lt.s32.totalorder %s164, 1
      %s168 = scalar_select %p167, %s164, 1
      %s169 = smul.addr %s166, 2
      %s170 = sadd.s32 %s168, %s169
      %s171 = smul.addr %s170, 8
      %s172 = scalar_lea.vmem %s0, %s171
      %p173 = pneg %p49
      %p174 = pneg %p46
      %p175 = pneg %p70
      %p176 = pneg %p67
      %p177 = pneg %p91
      %p178 = pneg %p88
      %p179 = pneg %p119
      %p180 = pneg %p116
      %s181 = smul.u32 2, %s19
      %p182 = scmp.lt.s32.totalorder %s18, 1
      %s183 = scalar_select %p182, %s18, 1
      %p184 = scmp.lt.s32.totalorder %s181, 1
      %s185 = scalar_select %p184, %s181, 1
      %s186 = smul.addr %s183, 2
      %s187 = sadd.s32 %s185, %s186
      %s188 = smul.addr %s187, 8
      %s189 = scalar_lea.vmem %s3, %s188
      %s190 = smul.u32 2, %s19
      %p191 = scmp.lt.s32.totalorder %s18, 1
      %s192 = scalar_select %p191, %s18, 1
      %p193 = scmp.lt.s32.totalorder %s190, 1
      %s194 = scalar_select %p193, %s190, 1
      %s195 = smul.addr %s192, 2
      %s196 = sadd.s32 %s194, %s195
      %s197 = smul.addr %s196, 8
      %s198 = scalar_lea.vmem %s0, %s197
      %s199 = smul.u32 2, %s19
      %s200 = smul.u32 2, %s19
      %p201 = scmp.lt.s32.totalorder %s18, 1
      %s202 = scalar_select %p201, %s18, 1
      %p203 = scmp.lt.s32.totalorder %s200, 1
      %s204 = scalar_select %p203, %s200, 1
      %s205 = smul.addr %s202, 2
      %s206 = sadd.s32 %s204, %s205
      %s207 = smul.addr %s206, 8
      %s208 = scalar_lea.vmem %s3, %s207
      %s209 = smul.u32 2, %s19
      %v210 = vld [vmem:[%s1] sm:$0xff]
      %v211 = vld [vmem:[%s198] sm:$0xff]
      %v212 = vld [vmem:[%s198 + $0x8] sm:$0xff]
      %v213 = vld [vmem:[%s2] sm:$0xff]
      %215 = vset.pattern.permute.xlu0 0
      %216 = vperm.xlu0 %215, %v213
      %v217 = vpop.permute.xlu0 %216
      %vm219 = vcmask 64512
      %v221 = vsel %vm219, %v210, 0
      %223 = vmatpush.msra.mxu0 0.0
      %224 = vmatpush.msra.mxu0 0.0
      %225 = vmatpush.msra.mxu0 0.0
      %226 = vmatpush.msra.mxu0 0.0
      %227 = vmatpush.msra.mxu0 0.0
      %228 = vmatpush.msra.mxu0 0.0
      %229 = vmatpush.msra.mxu0 0.0
      %230 = vmatpush.msra.mxu0 0.0
      %231 = vmatpush.msra.mxu0 0.0
      %232 = vmatpush.msra.mxu0 0.0
      %233 = vmatpush.msra.mxu0 0.0
      %234 = vmatpush.msra.mxu0 0.0
      %235 = vmatpush.msra.mxu0 0.0
      %236 = vmatpush.msra.mxu0 0.0
      %237 = vmatpush.msra.mxu0 0.0
      %238 = vmatpush.msra.mxu0 %v211
      %239 = vmatmul.f32.gmra.mxu0 %v221
      %v240 = vpop.f32.mrf.mxu0
      %v241 = vadd.f32 %v217, %v240
      %242 = vdwg.mxu0
      %243 = vmatpush.msra.mxu0 0.0
      %244 = vmatpush.msra.mxu0 0.0
      %245 = vmatpush.msra.mxu0 0.0
      %246 = vmatpush.msra.mxu0 0.0
      %247 = vmatpush.msra.mxu0 0.0
      %248 = vmatpush.msra.mxu0 0.0
      %249 = vmatpush.msra.mxu0 0.0
      %250 = vmatpush.msra.mxu0 0.0
      %251 = vmatpush.msra.mxu0 0.0
      %252 = vmatpush.msra.mxu0 0.0
      %253 = vmatpush.msra.mxu0 0.0
      %254 = vmatpush.msra.mxu0 0.0
      %255 = vmatpush.msra.mxu0 0.0
      %256 = vmatpush.msra.mxu0 0.0
      %257 = vmatpush.msra.mxu0 0.0
      %258 = vmatpush.msra.mxu0 %v212
      %259 = vmatmul.f32.gmra.mxu0 %v221
      %v260 = vpop.f32.mrf.mxu0
      %v261 = vadd.f32 %v217, %v260
      %262 = vdwg.mxu0
      %263 = vst [vmem:[%s208] sm:$0xff] %v241
      %264 = vst [vmem:[%s208 + $0x8] sm:$0xff] %v261
      %s265 = smul.u32 2, %s19
      %p266 = scmp.lt.s32.totalorder %s18, 1
      %s267 = scalar_select %p266, %s18, 1
      %p268 = scmp.lt.s32.totalorder %s265, 1
      %s269 = scalar_select %p268, %s265, 1
      %s270 = smul.addr %s267, 2
      %s271 = sadd.s32 %s269, %s270
      %s272 = smul.addr %s271, 8
      %s273 = scalar_lea.vmem %s3, %s272
      // Predicated region
      $region33: #{cross_attention_salsa.5} parent=31 // pred_check
        %p274 = pneg %p116
      $region34: #{cross_attention_salsa.5} parent=31 // pred_check_branch
        %276 = sbr.rel (%p274) target = $region36
      $region35: #{cross_attention_salsa.5} parent=31 // pred_region
        %s277 = smul.u32 2, %s19
      $region36: #{cross_attention_salsa.5} parent=31 // pred_fallthru
        _
    $region32: #{cross_attention_salsa.5} parent=5 // pred_fallthru
      _
    %p278 = scmp.le.s32.totalorder 2, %s9
    // Predicated region
    $region37: #{cross_attention_salsa.5} parent=5 // pred_check
      %p279 = pneg %p278
    $region38: #{cross_attention_salsa.5} parent=5 // pred_check_branch
      %281 = sbr.rel (%p279) target = $region40
    $region39: #{cross_attention_salsa.5} parent=5 // pred_region
      %s282 = ssub.s32 %s9, 2
      // Predicated region
      $region41: #{cross_attention_salsa.5} parent=39 // pred_check
        %p283 = pneg %p122
      $region42: #{cross_attention_salsa.5} parent=39 // pred_check_branch
        %285 = sbr.rel (%p283) target = $region44
      $region43: #{cross_attention_salsa.5} parent=39 // pred_region
        %s286 = smul.u32 2, %s21
        %p287 = scmp.lt.s32.totalorder %s20, 1
        %s288 = scalar_select %p287, %s20, 1
        %p289 = scmp.lt.s32.totalorder %s286, 1
        %s290 = scalar_select %p289, %s286, 1
        %s291 = smul.addr %s288, 2
        %s292 = sadd.s32 %s290, %s291
        %s293 = smul.addr %s292, 8
        %s294 = scalar_lea.vmem %s3, %s293
      $region44: #{cross_attention_salsa.5} parent=39 // pred_fallthru
        _
    $region40: #{cross_attention_salsa.5} parent=5 // pred_fallthru
      _
  $region6: #{cross_attention_salsa.5} parent=0 // loop_footer
    %s13 = sadd.s32 1, %s9
  $region7: #{cross_attention_salsa.5} parent=0 // loop_footer_branch
    %8 = sbr.rel target = $region3
  $region8: #{cross_attention_salsa.5} parent=0 // loop_exit
    _

// kernel: cross_attention_salsa.4
$region0: #{cross_attention_salsa.4}
  #allocation0 [shape = 'u32[]', space=smem, size = 0x4, offset = 0x4, fixed_abs, tag = 'smem constant byte address 0x4 - core index']
  #allocation1 [shape = 'u32[72,128]{1,0:T(1,128)}', space=vmem, size = 0x9000, scoped, tag = 'internal scratch']
  %s0 = inlined_call_operand.vmem [shape: f32[2,8,256], index: 0, kind: input, shape index: {}]
  %s1 = inlined_call_operand.vmem [shape: f32[4,8], index: 1, kind: input, shape index: {}]
  %s2 = inlined_call_operand.vmem [shape: f32[4,1], index: 2, kind: input, shape index: {}]
  %s3 = inlined_call_operand.vmem [shape: f32[2,4,256], index: 3, kind: output, shape index: {}]
  %s4 = sld [smem:[#allocation0]]
  $region45: #{cross_attention_salsa.4} parent=0
    _
  %s6 = ssub.s32 1, %s4
  %s7 = scalar_select 0, %s6, %s4
  loop: start=0, step=1, limit=4
  $region2: #{cross_attention_salsa.4} parent=0 // loop_pre_header
    _
  $region3: #{cross_attention_salsa.4} parent=0 // loop_header
    %s9 = sphi 0, %s13
    %p10 = scmp.ge.s32.totalorder %s9, 4
    %s16 = sphi 0, %s28
    %s17 = sphi 0, %s24
    %s18 = sphi 0, %s16
    %s19 = sphi 0, %s17
    %s20 = sphi 0, %s18
    %s21 = sphi 0, %s19
    %s33 = sphi 0, %s35
    %s36 = sphi 0, %s33
    %s37 = sphi 0, %s36
    %s53 = sphi 0, %s37
    %s57 = sphi 0, %s57
    %s59 = sphi 0, %s57
    %s60 = sphi 0, %s59
    %s74 = sphi 0, %s60
    %s78 = sphi 0, %s78
    %s80 = sphi 0, %s78
    %s81 = sphi 0, %s80
    %s95 = sphi 0, %s81
    %s103 = sphi 0, %s105
    %s106 = sphi 0, %s103
    %s107 = sphi 0, %s106
    %s123 = sphi 0, %s107
  $region4: #{cross_attention_salsa.4} parent=0 // loop_header_branch
    %12 = sbr.rel (%p10) target = $region8
  $region5: #{cross_attention_salsa.4} parent=0 // loop_body
    %s14 = ssub.s32 %s9, 1
    %s15 = ssub.s32 %s9, 2
    %s22 = sadd.s32 1, %s17
    %p23 = scmp.ge.s32.totalorder %s22, 1
    %s24 = scalar_select %p23, 0, %s22
    %s25 = sadd.s32 1, %s16
    %s26 = scalar_select %p23, %s25, %s16
    %p27 = scmp.ge.s32.totalorder %s26, 2
    %s28 = scalar_select %p27, 0, %s26
    %s29 = ssub.s32 %s16, %s28
    %s30 = ssub.s32 %s17, %s24
    %s31 = sor.u32 %s29, %s30
    %p32 = scmp.eq.s32.totalorder %s31, 0
    %s34 = sadd.s32 %s33, 1
    %s35 = scalar_select %p32, %s33, %s34
    %p38 = pneg %p32
    %p39 = scmp.eq.s32.totalorder %s9, 1
    %p40 = por %p38, %p39
    %p41 = scmp.ne.s32.totalorder %s33, %s36
    %p42 = scmp.eq.s32.totalorder %s9, 0
    %p43 = por %p41, %p42
    %p44 = scmp.ne.s32.totalorder %s33, %s36
    %p45 = scmp.eq.s32.totalorder %s14, 1
    %p46 = por %p44, %p45
    %p47 = scmp.ne.s32.totalorder %s36, %s37
    %p48 = scmp.eq.s32.totalorder %s14, 0
    %p49 = por %p47, %p48
    %p50 = scmp.ne.s32.totalorder %s36, %s37
    %p51 = scmp.eq.s32.totalorder %s15, 1
    %p52 = por %p50, %p51
    %p54 = scmp.ne.s32.totalorder %s37, %s53
    %p55 = scmp.eq.s32.totalorder %s15, 0
    %p56 = por %p54, %p55
    %s58 = sadd.s32 %s57, 1
    %p61 = scmp.eq.s32.totalorder %s9, 1
    %p62 = scmp.ne.s32.totalorder %s57, %s59
    %p63 = scmp.eq.s32.totalorder %s9, 0
    %p64 = por %p62, %p63
    %p65 = scmp.ne.s32.totalorder %s57, %s59
    %p66 = scmp.eq.s32.totalorder %s14, 1
    %p67 = por %p65, %p66
    %p68 = scmp.ne.s32.totalorder %s59, %s60
    %p69 = scmp.eq.s32.totalorder %s14, 0
    %p70 = por %p68, %p69
    %p71 = scmp.ne.s32.totalorder %s59, %s60
    %p72 = scmp.eq.s32.totalorder %s15, 1
    %p73 = por %p71, %p72
    %p75 = scmp.ne.s32.totalorder %s60, %s74
    %p76 = scmp.eq.s32.totalorder %s15, 0
    %p77 = por %p75, %p76
    %s79 = sadd.s32 %s78, 1
    %p82 = scmp.eq.s32.totalorder %s9, 1
    %p83 = scmp.ne.s32.totalorder %s78, %s80
    %p84 = scmp.eq.s32.totalorder %s9, 0
    %p85 = por %p83, %p84
    %p86 = scmp.ne.s32.totalorder %s78, %s80
    %p87 = scmp.eq.s32.totalorder %s14, 1
    %p88 = por %p86, %p87
    %p89 = scmp.ne.s32.totalorder %s80, %s81
    %p90 = scmp.eq.s32.totalorder %s14, 0
    %p91 = por %p89, %p90
    %p92 = scmp.ne.s32.totalorder %s80, %s81
    %p93 = scmp.eq.s32.totalorder %s15, 1
    %p94 = por %p92, %p93
    %p96 = scmp.ne.s32.totalorder %s81, %s95
    %p97 = scmp.eq.s32.totalorder %s15, 0
    %p98 = por %p96, %p97
    %s99 = ssub.s32 %s16, %s28
    %s100 = ssub.s32 %s17, %s24
    %s101 = sor.u32 %s99, %s100
    %p102 = scmp.eq.s32.totalorder %s101, 0
    %s104 = sadd.s32 %s103, 1
    %s105 = scalar_select %p102, %s103, %s104
    %p108 = pneg %p102
    %p109 = scmp.eq.s32.totalorder %s9, 1
    %p110 = por %p108, %p109
    %p111 = scmp.ne.s32.totalorder %s103, %s106
    %p112 = scmp.eq.s32.totalorder %s9, 0
    %p113 = por %p111, %p112
    %p114 = scmp.ne.s32.totalorder %s103, %s106
    %p115 = scmp.eq.s32.totalorder %s14, 1
    %p116 = por %p114, %p115
    %p117 = scmp.ne.s32.totalorder %s106, %s107
    %p118 = scmp.eq.s32.totalorder %s14, 0
    %p119 = por %p117, %p118
    %p120 = scmp.ne.s32.totalorder %s106, %s107
    %p121 = scmp.eq.s32.totalorder %s15, 1
    %p122 = por %p120, %p121
    %p124 = scmp.ne.s32.totalorder %s107, %s123
    %p125 = scmp.eq.s32.totalorder %s15, 0
    %p126 = por %p124, %p125
    %p127 = scmp.le.s32.totalorder 1, %s9
    %p128 = scmp.lt.s32.totalorder %s9, 3
    %p129 = pnand %p127, %p128
    %p130 = pneg %p129
    // Predicated region
    $region9: #{cross_attention_salsa.4} parent=5 // pred_check
      _
    $region10: #{cross_attention_salsa.4} parent=5 // pred_check_branch
      %132 = sbr.rel (%p129) target = $region12
    $region11: #{cross_attention_salsa.4} parent=5 // pred_region
      %s133 = ssub.s32 %s9, 1
      // Predicated region
      $region13: #{cross_attention_salsa.4} parent=11 // pred_check
        %p134 = pneg %p70
      $region14: #{cross_attention_salsa.4} parent=11 // pred_check_branch
        %136 = sbr.rel (%p134) target = $region16
      $region15: #{cross_attention_salsa.4} parent=11 // pred_region
        _
      $region16: #{cross_attention_salsa.4} parent=11 // pred_fallthru
        _
      // Predicated region
      $region17: #{cross_attention_salsa.4} parent=11 // pred_check
        %p137 = pneg %p91
      $region18: #{cross_attention_salsa.4} parent=11 // pred_check_branch
        %139 = sbr.rel (%p137) target = $region20
      $region19: #{cross_attention_salsa.4} parent=11 // pred_region
        _
      $region20: #{cross_attention_salsa.4} parent=11 // pred_fallthru
        _
    $region12: #{cross_attention_salsa.4} parent=5 // pred_fallthru
      _
    %p140 = scmp.lt.s32.totalorder %s9, 2
    // Predicated region
    $region21: #{cross_attention_salsa.4} parent=5 // pred_check
      %p141 = pneg %p140
    $region22: #{cross_attention_salsa.4} parent=5 // pred_check_branch
      %143 = sbr.rel (%p141) target = $region24
    $region23: #{cross_attention_salsa.4} parent=5 // pred_region
      // Predicated region
      $region25: #{cross_attention_salsa.4} parent=23 // pred_check
        %p144 = pneg %p43
      $region26: #{cross_attention_salsa.4} parent=23 // pred_check_branch
        %146 = sbr.rel (%p144) target = $region28
      $region27: #{cross_attention_salsa.4} parent=23 // pred_region
        %s147 = smul.u32 2, %s17
        %p148 = scmp.lt.s32.totalorder %s16, 1
        %s149 = scalar_select %p148, %s16, 1
        %p150 = scmp.lt.s32.totalorder %s147, 1
        %s151 = scalar_select %p150, %s147, 1
        %s152 = smul.addr %s149, 2
        %s153 = sadd.s32 %s151, %s152
        %s154 = smul.addr %s153, 8
        %s155 = scalar_lea.vmem %s0, %s154
        %s156 = smul.u32 2, %s17
      $region28: #{cross_attention_salsa.4} parent=23 // pred_fallthru
        _
    $region24: #{cross_attention_salsa.4} parent=5 // pred_fallthru
      _
    %p157 = scmp.le.s32.totalorder 1, %s9
    %p158 = scmp.lt.s32.totalorder %s9, 3
    %p159 = pnand %p157, %p158
    %p160 = pneg %p159
    // Predicated region
    $region29: #{cross_attention_salsa.4} parent=5 // pred_check
      _
    $region30: #{cross_attention_salsa.4} parent=5 // pred_check_branch
      %162 = sbr.rel (%p159) target = $region32
    $region31: #{cross_attention_salsa.4} parent=5 // pred_region
      %s163 = ssub.s32 %s9, 1
      %s164 = smul.u32 2, %s19
      %p165 = scmp.lt.s32.totalorder %s18, 1
      %s166 = scalar_select %p165, %s18, 1
      %p167 = scmp.lt.s32.totalorder %s164, 1
      %s168 = scalar_select %p167, %s164, 1
      %s169 = smul.addr %s166, 2
      %s170 = sadd.s32 %s168, %s169
      %s171 = smul.addr %s170, 8
      %s172 = scalar_lea.vmem %s0, %s171
      %p173 = pneg %p49
      %p174 = pneg %p46
      %p175 = pneg %p70
      %p176 = pneg %p67
      %p177 = pneg %p91
      %p178 = pneg %p88
      %p179 = pneg %p119
      %p180 = pneg %p116
      %s181 = smul.u32 2, %s19
      %p182 = scmp.lt.s32.totalorder %s18, 1
      %s183 = scalar_select %p182, %s18, 1
      %p184 = scmp.lt.s32.totalorder %s181, 1
      %s185 = scalar_select %p184, %s181, 1
      %s186 = smul.addr %s183, 2
      %s187 = sadd.s32 %s185, %s186
      %s188 = smul.addr %s187, 4
      %s189 = scalar_lea.vmem %s3, %s188
      %s190 = smul.u32 2, %s19
      %p191 = scmp.lt.s32.totalorder %s18, 1
      %s192 = scalar_select %p191, %s18, 1
      %p193 = scmp.lt.s32.totalorder %s190, 1
      %s194 = scalar_select %p193, %s190, 1
      %s195 = smul.addr %s192, 2
      %s196 = sadd.s32 %s194, %s195
      %s197 = smul.addr %s196, 8
      %s198 = scalar_lea.vmem %s0, %s197
      %s199 = smul.u32 2, %s19
      %s200 = smul.u32 2, %s19
      %p201 = scmp.lt.s32.totalorder %s18, 1
      %s202 = scalar_select %p201, %s18, 1
      %p203 = scmp.lt.s32.totalorder %s200, 1
      %s204 = scalar_select %p203, %s200, 1
      %s205 = smul.addr %s202, 2
      %s206 = sadd.s32 %s204, %s205
      %s207 = smul.addr %s206, 4
      %s208 = scalar_lea.vmem %s3, %s207
      %s209 = smul.u32 2, %s19
      %v210 = vld [vmem:[%s1] sm:$0xf]
      %v211 = vld [vmem:[%s198] sm:$0xff]
      %v212 = vld [vmem:[%s198 + $0x8] sm:$0xff]
      %v213 = vld [vmem:[%s2] sm:$0xf]
      %215 = vset.pattern.permute.xlu0 0
      %216 = vperm.xlu0 %215, %v213
      %v217 = vpop.permute.xlu0 %216
      %vm219 = vcmask 64512
      %v221 = vsel %vm219, %v210, 0
      %223 = vmatpush.msra.mxu0 0.0
      %224 = vmatpush.msra.mxu0 0.0
      %225 = vmatpush.msra.mxu0 0.0
      %226 = vmatpush.msra.mxu0 0.0
      %227 = vmatpush.msra.mxu0 0.0
      %228 = vmatpush.msra.mxu0 0.0
      %229 = vmatpush.msra.mxu0 0.0
      %230 = vmatpush.msra.mxu0 0.0
      %231 = vmatpush.msra.mxu0 0.0
      %232 = vmatpush.msra.mxu0 0.0
      %233 = vmatpush.msra.mxu0 0.0
      %234 = vmatpush.msra.mxu0 0.0
      %235 = vmatpush.msra.mxu0 0.0
      %236 = vmatpush.msra.mxu0 0.0
      %237 = vmatpush.msra.mxu0 0.0
      %238 = vmatpush.msra.mxu0 %v211
      %239 = vmatmul.f32.gmra.mxu0 %v221
      %v240 = vpop.f32.mrf.mxu0
      %v241 = vadd.f32 %v217, %v240
      %242 = vdwg.mxu0
      %243 = vmatpush.msra.mxu0 0.0
      %244 = vmatpush.msra.mxu0 0.0
      %245 = vmatpush.msra.mxu0 0.0
      %246 = vmatpush.msra.mxu0 0.0
      %247 = vmatpush.msra.mxu0 0.0
      %248 = vmatpush.msra.mxu0 0.0
      %249 = vmatpush.msra.mxu0 0.0
      %250 = vmatpush.msra.mxu0 0.0
      %251 = vmatpush.msra.mxu0 0.0
      %252 = vmatpush.msra.mxu0 0.0
      %253 = vmatpush.msra.mxu0 0.0
      %254 = vmatpush.msra.mxu0 0.0
      %255 = vmatpush.msra.mxu0 0.0
      %256 = vmatpush.msra.mxu0 0.0
      %257 = vmatpush.msra.mxu0 0.0
      %258 = vmatpush.msra.mxu0 %v212
      %259 = vmatmul.f32.gmra.mxu0 %v221
      %v260 = vpop.f32.mrf.mxu0
      %v261 = vadd.f32 %v217, %v260
      %262 = vdwg.mxu0
      %v265 = vrot.slane %v261, 4
      %vm266 = vcmask 1043456
      %v267 = vsel %vm266, %v241, %v265
      %269 = vst [vmem:[%s208] sm:$0xff] %v267
      %s270 = smul.u32 2, %s19
      %p271 = scmp.lt.s32.totalorder %s18, 1
      %s272 = scalar_select %p271, %s18, 1
      %p273 = scmp.lt.s32.totalorder %s270, 1
      %s274 = scalar_select %p273, %s270, 1
      %s275 = smul.addr %s272, 2
      %s276 = sadd.s32 %s274, %s275
      %s277 = smul.addr %s276, 4
      %s278 = scalar_lea.vmem %s3, %s277
      // Predicated region
      $region33: #{cross_attention_salsa.4} parent=31 // pred_check
        %p279 = pneg %p116
      $region34: #{cross_attention_salsa.4} parent=31 // pred_check_branch
        %281 = sbr.rel (%p279) target = $region36
      $region35: #{cross_attention_salsa.4} parent=31 // pred_region
        %s282 = smul.u32 2, %s19
      $region36: #{cross_attention_salsa.4} parent=31 // pred_fallthru
        _
    $region32: #{cross_attention_salsa.4} parent=5 // pred_fallthru
      _
    %p283 = scmp.le.s32.totalorder 2, %s9
    // Predicated region
    $region37: #{cross_attention_salsa.4} parent=5 // pred_check
      %p284 = pneg %p283
    $region38: #{cross_attention_salsa.4} parent=5 // pred_check_branch
      %286 = sbr.rel (%p284) target = $region40
    $region39: #{cross_attention_salsa.4} parent=5 // pred_region
      %s287 = ssub.s32 %s9, 2
      // Predicated region
      $region41: #{cross_attention_salsa.4} parent=39 // pred_check
        %p288 = pneg %p122
      $region42: #{cross_attention_salsa.4} parent=39 // pred_check_branch
        %290 = sbr.rel (%p288) target = $region44
      $region43: #{cross_attention_salsa.4} parent=39 // pred_region
        %s291 = smul.u32 2, %s21
        %p292 = scmp.lt.s32.totalorder %s20, 1
        %s293 = scalar_select %p292, %s20, 1
        %p294 = scmp.lt.s32.totalorder %s291, 1
        %s295 = scalar_select %p294, %s291, 1
        %s296 = smul.addr %s293, 2
        %s297 = sadd.s32 %s295, %s296
        %s298 = smul.addr %s297, 4
        %s299 = scalar_lea.vmem %s3, %s298
      $region44: #{cross_attention_salsa.4} parent=39 // pred_fallthru
        _
    $region40: #{cross_attention_salsa.4} parent=5 // pred_fallthru
      _
  $region6: #{cross_attention_salsa.4} parent=0 // loop_footer
    %s13 = sadd.s32 1, %s9
  $region7: #{cross_attention_salsa.4} parent=0 // loop_footer_branch
    %8 = sbr.rel target = $region3
  $region8: #{cross_attention_salsa.4} parent=0 // loop_exit
    _

// kernel: cross_attention_salsa.6
$region0: #{cross_attention_salsa.6}
  #allocation0 [shape = 'u32[]', space=smem, size = 0x4, offset = 0x4, fixed_abs, tag = 'smem constant byte address 0x4 - core index']
  #allocation1 [shape = 'u32[72,128]{1,0:T(1,128)}', space=vmem, size = 0x9000, scoped, tag = 'internal scratch']
  #allocation2 [shape = 'f32[1,16,1]{2,1,0:T(8,128)}', space=vmem, size = 0x2000, scoped, tag = 'scratch operand']
  #allocation3 [shape = 'f32[1,16,1]{2,1,0:T(8,128)}', space=vmem, size = 0x2000, scoped, tag = 'scratch operand']
  %s0 = inlined_call_operand.vmem [shape: bf16[2,16,196], index: 0, kind: input, shape index: {}]
  %s1 = inlined_call_operand.vmem [shape: bf16[2,196,16], index: 1, kind: input, shape index: {}]
  %s2 = inlined_call_operand.vmem [shape: bf16[2,16,196], index: 2, kind: input, shape index: {}]
  %s3 = inlined_call_operand.vmem [shape: f32[2,16,196], index: 3, kind: output, shape index: {}]
  %s4 = sld [smem:[#allocation0]]
  $region53: #{cross_attention_salsa.6} parent=0
    _
  %s6 = ssub.s32 1, %s4
  %s7 = scalar_select 0, %s6, %s4
  loop: start=0, step=1, limit=4
  $region2: #{cross_attention_salsa.6} parent=0 // loop_pre_header
    _
  $region3: #{cross_attention_salsa.6} parent=0 // loop_header
    %s9 = sphi 0, %s13
    %p10 = scmp.ge.s32.totalorder %s9, 4
    %s16 = sphi 0, %s35
    %s17 = sphi 0, %s31
    %s18 = sphi 0, %s27
    %s19 = sphi 0, %s16
    %s20 = sphi 0, %s17
    %s21 = sphi 0, %s18
    %s22 = sphi 0, %s19
    %s23 = sphi 0, %s20
    %s24 = sphi 0, %s21
    %s40 = sphi 0, %s42
    %s43 = sphi 0, %s40
    %s44 = sphi 0, %s43
    %s60 = sphi 0, %s44
    %s68 = sphi 0, %s70
    %s71 = sphi 0, %s68
    %s72 = sphi 0, %s71
    %s88 = sphi 0, %s72
    %s96 = sphi 0, %s98
    %s99 = sphi 0, %s96
    %s100 = sphi 0, %s99
    %s116 = sphi 0, %s100
    %s124 = sphi 0, %s126
    %s127 = sphi 0, %s124
    %s128 = sphi 0, %s127
    %s144 = sphi 0, %s128
  $region4: #{cross_attention_salsa.6} parent=0 // loop_header_branch
    %12 = sbr.rel (%p10) target = $region8
  $region5: #{cross_attention_salsa.6} parent=0 // loop_body
    %s14 = ssub.s32 %s9, 1
    %s15 = ssub.s32 %s9, 2
    %s25 = sadd.s32 1, %s18
    %p26 = scmp.ge.s32.totalorder %s25, 1
    %s27 = scalar_select %p26, 0, %s25
    %s28 = sadd.s32 1, %s17
    %s29 = scalar_select %p26, %s28, %s17
    %p30 = scmp.ge.s32.totalorder %s29, 1
    %s31 = scalar_select %p30, 0, %s29
    %s32 = sadd.s32 1, %s16
    %s33 = scalar_select %p30, %s32, %s16
    %p34 = scmp.ge.s32.totalorder %s33, 2
    %s35 = scalar_select %p34, 0, %s33
    %s36 = ssub.s32 %s16, %s35
    %s37 = ssub.s32 %s17, %s31
    %s38 = sor.u32 %s36, %s37
    %p39 = scmp.eq.s32.totalorder %s38, 0
    %s41 = sadd.s32 %s40, 1
    %s42 = scalar_select %p39, %s40, %s41
    %p45 = pneg %p39
    %p46 = scmp.eq.s32.totalorder %s9, 1
    %p47 = por %p45, %p46
    %p48 = scmp.ne.s32.totalorder %s40, %s43
    %p49 = scmp.eq.s32.totalorder %s9, 0
    %p50 = por %p48, %p49
    %p51 = scmp.ne.s32.totalorder %s40, %s43
    %p52 = scmp.eq.s32.totalorder %s14, 1
    %p53 = por %p51, %p52
    %p54 = scmp.ne.s32.totalorder %s43, %s44
    %p55 = scmp.eq.s32.totalorder %s14, 0
    %p56 = por %p54, %p55
    %p57 = scmp.ne.s32.totalorder %s43, %s44
    %p58 = scmp.eq.s32.totalorder %s15, 1
    %p59 = por %p57, %p58
    %p61 = scmp.ne.s32.totalorder %s44, %s60
    %p62 = scmp.eq.s32.totalorder %s15, 0
    %p63 = por %p61, %p62
    %s64 = ssub.s32 %s16, %s35
    %s65 = ssub.s32 %s18, %s27
    %s66 = sor.u32 %s64, %s65
    %p67 = scmp.eq.s32.totalorder %s66, 0
    %s69 = sadd.s32 %s68, 1
    %s70 = scalar_select %p67, %s68, %s69
    %p73 = pneg %p67
    %p74 = scmp.eq.s32.totalorder %s9, 1
    %p75 = por %p73, %p74
    %p76 = scmp.ne.s32.totalorder %s68, %s71
    %p77 = scmp.eq.s32.totalorder %s9, 0
    %p78 = por %p76, %p77
    %p79 = scmp.ne.s32.totalorder %s68, %s71
    %p80 = scmp.eq.s32.totalorder %s14, 1
    %p81 = por %p79, %p80
    %p82 = scmp.ne.s32.totalorder %s71, %s72
    %p83 = scmp.eq.s32.totalorder %s14, 0
    %p84 = por %p82, %p83
    %p85 = scmp.ne.s32.totalorder %s71, %s72
    %p86 = scmp.eq.s32.totalorder %s15, 1
    %p87 = por %p85, %p86
    %p89 = scmp.ne.s32.totalorder %s72, %s88
    %p90 = scmp.eq.s32.totalorder %s15, 0
    %p91 = por %p89, %p90
    %s92 = ssub.s32 %s16, %s35
    %s93 = ssub.s32 %s18, %s27
    %s94 = sor.u32 %s92, %s93
    %p95 = scmp.eq.s32.totalorder %s94, 0
    %s97 = sadd.s32 %s96, 1
    %s98 = scalar_select %p95, %s96, %s97
    %p101 = pneg %p95
    %p102 = scmp.eq.s32.totalorder %s9, 1
    %p103 = por %p101, %p102
    %p104 = scmp.ne.s32.totalorder %s96, %s99
    %p105 = scmp.eq.s32.totalorder %s9, 0
    %p106 = por %p104, %p105
    %p107 = scmp.ne.s32.totalorder %s96, %s99
    %p108 = scmp.eq.s32.totalorder %s14, 1
    %p109 = por %p107, %p108
    %p110 = scmp.ne.s32.totalorder %s99, %s100
    %p111 = scmp.eq.s32.totalorder %s14, 0
    %p112 = por %p110, %p111
    %p113 = scmp.ne.s32.totalorder %s99, %s100
    %p114 = scmp.eq.s32.totalorder %s15, 1
    %p115 = por %p113, %p114
    %p117 = scmp.ne.s32.totalorder %s100, %s116
    %p118 = scmp.eq.s32.totalorder %s15, 0
    %p119 = por %p117, %p118
    %s120 = ssub.s32 %s16, %s35
    %s121 = ssub.s32 %s17, %s31
    %s122 = sor.u32 %s120, %s121
    %p123 = scmp.eq.s32.totalorder %s122, 0
    %s125 = sadd.s32 %s124, 1
    %s126 = scalar_select %p123, %s124, %s125
    %p129 = pneg %p123
    %p130 = scmp.eq.s32.totalorder %s9, 1
    %p131 = por %p129, %p130
    %p132 = scmp.ne.s32.totalorder %s124, %s127
    %p133 = scmp.eq.s32.totalorder %s9, 0
    %p134 = por %p132, %p133
    %p135 = scmp.ne.s32.totalorder %s124, %s127
    %p136 = scmp.eq.s32.totalorder %s14, 1
    %p137 = por %p135, %p136
    %p138 = scmp.ne.s32.totalorder %s127, %s128
    %p139 = scmp.eq.s32.totalorder %s14, 0
    %p140 = por %p138, %p139
    %p141 = scmp.ne.s32.totalorder %s127, %s128
    %p142 = scmp.eq.s32.totalorder %s15, 1
    %p143 = por %p141, %p142
    %p145 = scmp.ne.s32.totalorder %s128, %s144
    %p146 = scmp.eq.s32.totalorder %s15, 0
    %p147 = por %p145, %p146
    %p148 = scmp.le.s32.totalorder 1, %s9
    %p149 = scmp.lt.s32.totalorder %s9, 3
    %p150 = pnand %p148, %p149
    %p151 = pneg %p150
    // Predicated region
    $region9: #{cross_attention_salsa.6} parent=5 // pred_check
      _
    $region10: #{cross_attention_salsa.6} parent=5 // pred_check_branch
      %153 = sbr.rel (%p150) target = $region12
    $region11: #{cross_attention_salsa.6} parent=5 // pred_region
      %s154 = ssub.s32 %s9, 1
    $region12: #{cross_attention_salsa.6} parent=5 // pred_fallthru
      _
    %p155 = scmp.lt.s32.totalorder %s9, 2
    // Predicated region
    $region13: #{cross_attention_salsa.6} parent=5 // pred_check
      %p156 = pneg %p155
    $region14: #{cross_attention_salsa.6} parent=5 // pred_check_branch
      %158 = sbr.rel (%p156) target = $region16
    $region15: #{cross_attention_salsa.6} parent=5 // pred_region
      // Predicated region
      $region17: #{cross_attention_salsa.6} parent=15 // pred_check
        %p159 = pneg %p50
      $region18: #{cross_attention_salsa.6} parent=15 // pred_check_branch
        %161 = sbr.rel (%p159) target = $region20
      $region19: #{cross_attention_salsa.6} parent=15 // pred_region
        %s162 = smul.u32 2, %s17
        %p163 = scmp.lt.s32.totalorder %s16, 1
        %s164 = scalar_select %p163, %s16, 1
        %p165 = scmp.lt.s32.totalorder %s162, 1
        %s166 = scalar_select %p165, %s162, 1
        %s167 = smul.addr %s166, 2
        %s168 = smul.addr %s164, 4
        %s169 = sadd.s32 %s167, %s168
        %s170 = smul.addr %s169, 4
        %s171 = scalar_lea.vmem %s0, %s170
        %s172 = smul.u32 2, %s17
      $region20: #{cross_attention_salsa.6} parent=15 // pred_fallthru
        _
      // Predicated region
      $region21: #{cross_attention_salsa.6} parent=15 // pred_check
        %p173 = pneg %p78
      $region22: #{cross_attention_salsa.6} parent=15 // pred_check_branch
        %175 = sbr.rel (%p173) target = $region24
      $region23: #{cross_attention_salsa.6} parent=15 // pred_region
        %p176 = scmp.lt.s32.totalorder %s16, 1
        %s177 = scalar_select %p176, %s16, 1
        %p178 = scmp.lt.s32.totalorder %s18, 0
        %s179 = scalar_select %p178, %s18, 0
        %s180 = smul.addr %s177, 25
        %s181 = sadd.s32 %s179, %s180
        %s182 = smul.addr %s181, 4
        %s183 = scalar_lea.vmem %s1, %s182
      $region24: #{cross_attention_salsa.6} parent=15 // pred_fallthru
        _
      // Predicated region
      $region25: #{cross_attention_salsa.6} parent=15 // pred_check
        %p184 = pneg %p106
      $region26: #{cross_attention_salsa.6} parent=15 // pred_check_branch
        %186 = sbr.rel (%p184) target = $region28
      $region27: #{cross_attention_salsa.6} parent=15 // pred_region
        %s187 = smul.u32 2, %s18
        %p188 = scmp.lt.s32.totalorder %s16, 1
        %s189 = scalar_select %p188, %s16, 1
        %p190 = scmp.lt.s32.totalorder %s187, 1
        %s191 = scalar_select %p190, %s187, 1
        %s192 = smul.addr %s191, 2
        %s193 = smul.addr %s189, 4
        %s194 = sadd.s32 %s192, %s193
        %s195 = smul.addr %s194, 4
        %s196 = scalar_lea.vmem %s2, %s195
        %s197 = smul.u32 2, %s18
      $region28: #{cross_attention_salsa.6} parent=15 // pred_fallthru
        _
    $region16: #{cross_attention_salsa.6} parent=5 // pred_fallthru
      _
    %p198 = scmp.le.s32.totalorder 1, %s9
    %p199 = scmp.lt.s32.totalorder %s9, 3
    %p200 = pnand %p198, %p199
    %p201 = pneg %p200
    // Predicated region
    $region29: #{cross_attention_salsa.6} parent=5 // pred_check
      _
    $region30: #{cross_attention_salsa.6} parent=5 // pred_check_branch
      %203 = sbr.rel (%p200) target = $region32
    $region31: #{cross_attention_salsa.6} parent=5 // pred_region
      %s204 = ssub.s32 %s9, 1
      %s205 = smul.u32 2, %s20
      %p206 = scmp.lt.s32.totalorder %s19, 1
      %s207 = scalar_select %p206, %s19, 1
      %p208 = scmp.lt.s32.totalorder %s205, 1
      %s209 = scalar_select %p208, %s205, 1
      %s210 = smul.addr %s209, 2
      %s211 = smul.addr %s207, 4
      %s212 = sadd.s32 %s210, %s211
      %s213 = smul.addr %s212, 4
      %s214 = scalar_lea.vmem %s0, %s213
      %p215 = pneg %p56
      %p216 = pneg %p53
      %p217 = scmp.lt.s32.totalorder %s19, 1
      %s218 = scalar_select %p217, %s19, 1
      %p219 = scmp.lt.s32.totalorder %s21, 0
      %s220 = scalar_select %p219, %s21, 0
      %s221 = smul.addr %s218, 25
      %s222 = sadd.s32 %s220, %s221
      %s223 = smul.addr %s222, 4
      %s224 = scalar_lea.vmem %s1, %s223
      %p225 = pneg %p84
      %p226 = pneg %p81
      %s227 = smul.u32 2, %s21
      %p228 = scmp.lt.s32.totalorder %s19, 1
      %s229 = scalar_select %p228, %s19, 1
      %p230 = scmp.lt.s32.totalorder %s227, 1
      %s231 = scalar_select %p230, %s227, 1
      %s232 = smul.addr %s231, 2
      %s233 = smul.addr %s229, 4
      %s234 = sadd.s32 %s232, %s233
      %s235 = smul.addr %s234, 4
      %s236 = scalar_lea.vmem %s2, %s235
      %p237 = pneg %p112
      %p238 = pneg %p109
      %p239 = pneg %p140
      %p240 = pneg %p137
      %s241 = smul.u32 2, %s20
      %p242 = scmp.lt.s32.totalorder %s19, 1
      %s243 = scalar_select %p242, %s19, 1
      %p244 = scmp.lt.s32.totalorder %s241, 1
      %s245 = scalar_select %p244, %s241, 1
      %s246 = smul.addr %s245, 2
      %s247 = smul.addr %s243, 4
      %s248 = sadd.s32 %s246, %s247
      %s249 = smul.addr %s248, 8
      %s250 = scalar_lea.vmem %s3, %s249
      %s251 = smul.u32 2, %s20
      %p252 = scmp.lt.s32.totalorder %s19, 1
      %s253 = scalar_select %p252, %s19, 1
      %p254 = scmp.lt.s32.totalorder %s251, 1
      %s255 = scalar_select %p254, %s251, 1
      %s256 = smul.addr %s255, 2
      %s257 = smul.addr %s253, 4
      %s258 = sadd.s32 %s256, %s257
      %s259 = smul.addr %s258, 4
      %s260 = scalar_lea.vmem %s0, %s259
      %s261 = smul.u32 2, %s20
      %p262 = scmp.lt.s32.totalorder %s19, 1
      %s263 = scalar_select %p262, %s19, 1
      %p264 = scmp.lt.s32.totalorder %s21, 0
      %s265 = scalar_select %p264, %s21, 0
      %s266 = smul.addr %s263, 25
      %s267 = sadd.s32 %s265, %s266
      %s268 = smul.addr %s267, 4
      %s269 = scalar_lea.vmem %s1, %s268
      %s270 = smul.u32 2, %s21
      %p271 = scmp.lt.s32.totalorder %s19, 1
      %s272 = scalar_select %p271, %s19, 1
      %p273 = scmp.lt.s32.totalorder %s270, 1
      %s274 = scalar_select %p273, %s270, 1
      %s275 = smul.addr %s274, 2
      %s276 = smul.addr %s272, 4
      %s277 = sadd.s32 %s275, %s276
      %s278 = smul.addr %s277, 4
      %s279 = scalar_lea.vmem %s2, %s278
      %s280 = smul.u32 2, %s21
      %s281 = smul.u32 2, %s20
      %p282 = scmp.lt.s32.totalorder %s19, 1
      %s283 = scalar_select %p282, %s19, 1
      %p284 = scmp.lt.s32.totalorder %s281, 1
      %s285 = scalar_select %p284, %s281, 1
      %s286 = smul.addr %s285, 2
      %s287 = smul.addr %s283, 4
      %s288 = sadd.s32 %s286, %s287
      %s289 = smul.addr %s288, 8
      %s290 = scalar_lea.vmem %s3, %s289
      %s291 = smul.u32 2, %s20
      %p293 = scmp.eq.s32.totalorder %s21, 0
      // Predicated region
      $region33: #{cross_attention_salsa.6} parent=31 // pred_check
        %p294 = pneg %p293
      $region34: #{cross_attention_salsa.6} parent=31 // pred_check_branch
        %296 = sbr.rel (%p294) target = $region36
      $region35: #{cross_attention_salsa.6} parent=31 // pred_region
        %vm297 = vcmask 7168
        %298 = vst.msk [vmem:[#allocation2] sm:$0xff] %vm297, -inf
        %299 = vst.msk [vmem:[#allocation2 + $0x8] sm:$0xff] %vm297, -inf
        %300 = vst.msk [vmem:[#allocation3] sm:$0xff] %vm297, 0.0
        %301 = vst.msk [vmem:[#allocation3 + $0x8] sm:$0xff] %vm297, 0.0
        %302 = vst [vmem:[%s290] sm:$0xff] 0.0
        %vm303 = vcmask 556032
        %304 = vst.msk [vmem:[%s290 + $0x8] sm:$0xff] %vm303, 0.0
        %305 = vst [vmem:[%s290 + $0x10] sm:$0xff] 0.0
        %306 = vst.msk [vmem:[%s290 + $0x18] sm:$0xff] %vm303, 0.0
      $region36: #{cross_attention_salsa.6} parent=31 // pred_fallthru
        _
      %v307 = vld [vmem:[%s260] sm:$0xff]
      %v308 = vld [vmem:[%s260 + $0x8] sm:$0xff]
      %v309 = vld [vmem:[%s269] sm:$0xf]
      %v310 = vld [vmem:[%s269 + $0x4] sm:$0xf]
      %v311 = vld [vmem:[%s269 + $0x8] sm:$0xf]
      %v312 = vld [vmem:[%s269 + $0xc] sm:$0xf]
      %v313 = vld [vmem:[%s269 + $0x10] sm:$0xf]
      %v314 = vld [vmem:[%s269 + $0x14] sm:$0xf]
      %v315 = vld [vmem:[%s269 + $0x18] sm:$0xf]
      %v316 = vld [vmem:[%s269 + $0x1c] sm:$0xf]
      %v317 = vld [vmem:[%s269 + $0x20] sm:$0xf]
      %v318 = vld [vmem:[%s269 + $0x24] sm:$0xf]
      %v319 = vld [vmem:[%s269 + $0x28] sm:$0xf]
      %v320 = vld [vmem:[%s269 + $0x2c] sm:$0xf]
      %v321 = vld [vmem:[%s269 + $0x30] sm:$0xf]
      %v322 = vld [vmem:[%s269 + $0x34] sm:$0xf]
      %v323 = vld [vmem:[%s269 + $0x38] sm:$0xf]
      %v324 = vld [vmem:[%s269 + $0x3c] sm:$0xf]
      %v325 = vld [vmem:[%s269 + $0x40] sm:$0xf]
      %v326 = vld [vmem:[%s269 + $0x44] sm:$0xf]
      %v327 = vld [vmem:[%s269 + $0x48] sm:$0xf]
      %v328 = vld [vmem:[%s269 + $0x4c] sm:$0xf]
      %v329 = vld [vmem:[%s269 + $0x50] sm:$0xf]
      %v330 = vld [vmem:[%s269 + $0x54] sm:$0xf]
      %v331 = vld [vmem:[%s269 + $0x58] sm:$0xf]
      %v332 = vld [vmem:[%s269 + $0x5c] sm:$0xf]
      %v333 = vld [vmem:[%s269 + $0x60] sm:$0x3]
      %v334 = vld [vmem:[%s279] sm:$0xff]
      %v335 = vld [vmem:[%s279 + $0x8] sm:$0xff]
      %v338 = vunpack.c.l.b16 %v307
      %v339 = vunpack.c.h.b16 %v307
      %v340 = vunpack.c.l.b16 %v308
      %v341 = vunpack.c.h.b16 %v308
      %v342 = vpack.c.b16 %v340, %v338
      %v343 = vpack.c.b16 %v341, %v339
      %v370 = vunpack.c.l.b16 %v309
      %v371 = vunpack.c.l.b16 %v310
      %v372 = vunpack.c.l.b16 %v311
      %v373 = vunpack.c.l.b16 %v312
      %v374 = vunpack.c.l.b16 %v313
      %v375 = vunpack.c.l.b16 %v314
      %v376 = vunpack.c.l.b16 %v315
      %v377 = vunpack.c.l.b16 %v316
      %v378 = vunpack.c.l.b16 %v317
      %v379 = vunpack.c.l.b16 %v318
      %v380 = vunpack.c.l.b16 %v319
      %v381 = vunpack.c.l.b16 %v320
      %v382 = vunpack.c.l.b16 %v321
      %v383 = vunpack.c.l.b16 %v322
      %v384 = vunpack.c.l.b16 %v323
      %v385 = vunpack.c.l.b16 %v324
      %v386 = vunpack.c.l.b16 %v325
      %v387 = vunpack.c.l.b16 %v326
      %v388 = vunpack.c.l.b16 %v327
      %v389 = vunpack.c.l.b16 %v328
      %v390 = vunpack.c.l.b16 %v329
      %v391 = vunpack.c.l.b16 %v330
      %v392 = vunpack.c.l.b16 %v331
      %v393 = vunpack.c.l.b16 %v332
      %v394 = vunpack.c.l.b16 %v333
      %v395 = vpack.c.b16 %v371, %v370
      %v396 = vpack.c.b16 %v373, %v372
      %v397 = vpack.c.b16 %v375, %v374
      %v398 = vpack.c.b16 %v377, %v376
      %v399 = vpack.c.b16 %v379, %v378
      %v400 = vpack.c.b16 %v381, %v380
      %v401 = vpack.c.b16 %v383, %v382
      %v402 = vpack.c.b16 %v385, %v384
      %v403 = vpack.c.b16 %v387, %v386
      %v404 = vpack.c.b16 %v389, %v388
      %v405 = vpack.c.b16 %v391, %v390
      %v406 = vpack.c.b16 %v393, %v392
      %v407 = vpack.c.b16 %v394, %v394
      %vm420 = vcmask 556032
      %v422 = vsel %vm420, %v343, 0
      %vm424 = vcmask 1041408
      %v426 = vsel %vm424, %v407, 0
      %428 = vmatpush.bf16.msra.mxu0 %v402
      %429 = vmatpush.bf16.msra.mxu0 %v401
      %430 = vmatpush.bf16.msra.mxu0 %v400
      %431 = vmatpush.bf16.msra.mxu0 %v399
      %432 = vmatpush.bf16.msra.mxu0 %v398
      %433 = vmatpush.bf16.msra.mxu0 %v397
      %434 = vmatpush.bf16.msra.mxu0 %v396
      %435 = vmatpush.bf16.msra.mxu0 %v395
      %436 = vmatmul.bf16.gmra.mxu0 %v342
      %v437 = vpop.f32.mrf.mxu0
      %v438 = vadd.f32 0.0, %v437
      %v439 = vpop.f32.mrf.mxu0
      %v440 = vadd.f32 0.0, %v439
      %441 = vdwg.mxu0
      %442 = vmatpush.bf16.msra.mxu0 0
      %443 = vmatpush.bf16.msra.mxu0 0
      %444 = vmatpush.bf16.msra.mxu0 0
      %445 = vmatpush.bf16.msra.mxu0 %v426
      %446 = vmatpush.bf16.msra.mxu0 %v406
      %447 = vmatpush.bf16.msra.mxu0 %v405
      %448 = vmatpush.bf16.msra.mxu0 %v404
      %449 = vmatpush.bf16.msra.mxu0 %v403
      %450 = vmatmul.bf16.gmra.mxu0 %v422
      %v451 = vpop.f32.mrf.mxu0
      %v452 = vadd.f32 %v438, %v451
      %v453 = vpop.f32.mrf.mxu0
      %v454 = vadd.f32 %v440, %v453
      %455 = vdwg.mxu0
      %v456 = vld [vmem:[#allocation2] sm:$0xff]
      %v457 = vld [vmem:[#allocation2 + $0x8] sm:$0xff]
      %vm458 = vcmask 130048
      %v459 = vsel %vm458, %v452, -inf
      %460 = vmax.xlane.f32.xlu0 %v459
      %v461 = vpop.xlane.xlu0 %460
      %v462 = vsel %vm458, %v454, -inf
      %463 = vmax.xlane.f32.xlu0 %v462
      %v464 = vpop.xlane.xlu0 %463
      %v465 = vmax.f32 %v456, %v461
      %v466 = vmax.f32 %v457, %v464
      %v467 = vsub.f32 %v456, %v465
      %v468 = vsub.f32 %v457, %v466
      %v469 = vmul.f32 %v467, 1.442695
      %v470 = vpow.pop %v469
      %v471 = vmul.f32 %v468, 1.442695
      %v472 = vpow.pop %v471
      %474 = vset.pattern.permute.xlu0 0
      %475 = vperm.xlu0 %474, %v465
      %v476 = vpop.permute.xlu0 %475
      %479 = vset.pattern.permute.xlu0 0
      %480 = vperm.xlu0 %479, %v466
      %v481 = vpop.permute.xlu0 %480
      %v483 = vsub.f32 %v452, %v476
      %v484 = vsub.f32 %v454, %v481
      %v485 = vmul.f32 %v483, 1.442695
      %v486 = vpow.pop %v485
      %v487 = vmul.f32 %v484, 1.442695
      %v488 = vpow.pop %v487
      %v489 = vld [vmem:[#allocation3] sm:$0xff]
      %v490 = vld [vmem:[#allocation3 + $0x8] sm:$0xff]
      %v491 = vmul.f32 %v470, %v489
      %v492 = vmul.f32 %v472, %v490
      %v493 = vsel %vm458, %v486, 0.0
      %494 = vadd.xlane.f32.xlu0 %v493
      %v495 = vpop.xlane.xlu0 %494
      %v496 = vsel %vm458, %v488, 0.0
      %497 = vadd.xlane.f32.xlu0 %v496
      %v498 = vpop.xlane.xlu0 %497
      %v499 = vadd.f32 %v491, %v495
      %v500 = vadd.f32 %v492, %v498
      %vm501 = vcmask 7168
      %502 = vst.msk [vmem:[#allocation3] sm:$0xff] %vm501, %v499
      %503 = vst.msk [vmem:[#allocation3 + $0x8] sm:$0xff] %vm501, %v500
      %v504 = vld [vmem:[%s290] sm:$0xff]
      %v505 = vld [vmem:[%s290 + $0x8] sm:$0xff]
      %v506 = vld [vmem:[%s290 + $0x10] sm:$0xff]
      %v507 = vld [vmem:[%s290 + $0x18] sm:$0xff]
      %509 = vset.pattern.permute.xlu0 0
      %510 = vperm.xlu0 %509, %v470
      %v511 = vpop.permute.xlu0 %510
      %514 = vset.pattern.permute.xlu0 0
      %515 = vperm.xlu0 %514, %v472
      %v516 = vpop.permute.xlu0 %515
      %v518 = vmul.f32 %v511, %v504
      %v519 = vmul.f32 %v511, %v505
      %v520 = vmul.f32 %v516, %v506
      %v521 = vmul.f32 %v516, %v507
      %v522 = vpack.c.bf16 %v488, %v486
      %v525 = vunpack.c.l.b16 %v334
      %v526 = vunpack.c.h.b16 %v334
      %v527 = vunpack.c.l.b16 %v335
      %v528 = vunpack.c.h.b16 %v335
      %v529 = vpack.c.b16 %v527, %v525
      %v530 = vpack.c.b16 %v528, %v526
      %v534 = vsel %vm458, %v522, 0
      %536 = vmatpush.bf16.msra.mxu0 0
      %537 = vmatpush.bf16.msra.mxu0 0
      %538 = vmatpush.bf16.msra.mxu0 0
      %539 = vmatpush.bf16.msra.mxu0 0
      %540 = vmatpush.bf16.msra.mxu0 0
      %541 = vmatpush.bf16.msra.mxu0 0
      %542 = vmatpush.bf16.msra.mxu0 0
      %543 = vmatpush.bf16.msra.mxu0 %v529
      %544 = vmatmul.bf16.gmra.mxu0 %v534
      %v545 = vpop.f32.mrf.mxu0
      %v546 = vadd.f32 0.0, %v545
      %v547 = vpop.f32.mrf.mxu0
      %v548 = vadd.f32 0.0, %v547
      %549 = vdwg.mxu0
      %550 = vmatpush.bf16.msra.mxu0 0
      %551 = vmatpush.bf16.msra.mxu0 0
      %552 = vmatpush.bf16.msra.mxu0 0
      %553 = vmatpush.bf16.msra.mxu0 0
      %554 = vmatpush.bf16.msra.mxu0 0
      %555 = vmatpush.bf16.msra.mxu0 0
      %556 = vmatpush.bf16.msra.mxu0 0
      %557 = vmatpush.bf16.msra.mxu0 %v530
      %558 = vmatmul.bf16.gmra.mxu0 %v534
      %v559 = vpop.f32.mrf.mxu0
      %v560 = vadd.f32 0.0, %v559
      %v561 = vpop.f32.mrf.mxu0
      %v562 = vadd.f32 0.0, %v561
      %563 = vdwg.mxu0
      %v564 = vadd.f32 %v518, %v546
      %v565 = vadd.f32 %v519, %v560
      %v566 = vadd.f32 %v520, %v548
      %v567 = vadd.f32 %v521, %v562
      %568 = vst [vmem:[%s290] sm:$0xff] %v564
      %569 = vst.msk [vmem:[%s290 + $0x8] sm:$0xff] %vm420, %v565
      %570 = vst [vmem:[%s290 + $0x10] sm:$0xff] %v566
      %571 = vst.msk [vmem:[%s290 + $0x18] sm:$0xff] %vm420, %v567
      %572 = vst.msk [vmem:[#allocation2] sm:$0xff] %vm501, %v465
      %573 = vst.msk [vmem:[#allocation2 + $0x8] sm:$0xff] %vm501, %v466
      // Predicated region
      $region37: #{cross_attention_salsa.6} parent=31 // pred_check
        %p574 = pneg %p293
      $region38: #{cross_attention_salsa.6} parent=31 // pred_check_branch
        %576 = sbr.rel (%p574) target = $region40
      $region39: #{cross_attention_salsa.6} parent=31 // pred_region
        %v577 = vld [vmem:[%s290] sm:$0xff]
        %v578 = vld [vmem:[%s290 + $0x8] sm:$0xff]
        %v579 = vld [vmem:[%s290 + $0x10] sm:$0xff]
        %v580 = vld [vmem:[%s290 + $0x18] sm:$0xff]
        %v581 = vld [vmem:[#allocation3] sm:$0xff]
        %v582 = vld [vmem:[#allocation3 + $0x8] sm:$0xff]
        %v583 = vrcp.pop %v581
        %v584 = vmul.f32 %v581, %v583
        %v585 = vsub.f32 1.0, %v584
        %v586 = vmul.f32 %v583, %v585
        %v587 = vadd.f32 %v583, %v586
        %vm588 = vweird.f32 %v581
        %vm589 = vweird.f32 %v583
        %vm590 = vmor %vm588, %vm589
        %v591 = vsel %vm590, %v583, %v587
        %v592 = vand.u32 2147483647, %v581
        %vm593 = vcmp.eq.f32.partialorder %v592, 8.507059e+37
        %v594 = vand.u32 %v581, 2147483648
        %v595 = vor.u32 1.1754944e-38, %v594
        %v596 = vsel %vm593, %v595, %v591
        %v597 = vrcp.pop %v582
        %v598 = vmul.f32 %v582, %v597
        %v599 = vsub.f32 1.0, %v598
        %v600 = vmul.f32 %v597, %v599
        %v601 = vadd.f32 %v597, %v600
        %vm602 = vweird.f32 %v582
        %vm603 = vweird.f32 %v597
        %vm604 = vmor %vm602, %vm603
        %v605 = vsel %vm604, %v597, %v601
        %v606 = vand.u32 2147483647, %v582
        %vm607 = vcmp.eq.f32.partialorder %v606, 8.507059e+37
        %v608 = vand.u32 %v582, 2147483648
        %v609 = vor.u32 1.1754944e-38, %v608
        %v610 = vsel %vm607, %v609, %v605
        %612 = vset.pattern.permute.xlu0 0
        %613 = vperm.xlu0 %612, %v596
        %v614 = vpop.permute.xlu0 %613
        %617 = vset.pattern.permute.xlu0 0
        %618 = vperm.xlu0 %617, %v610
        %v619 = vpop.permute.xlu0 %618
        %v621 = vmul.f32 %v577, %v614
        %v622 = vmul.f32 %v578, %v614
        %v623 = vmul.f32 %v579, %v619
        %v624 = vmul.f32 %v580, %v619
        %625 = vst [vmem:[%s290] sm:$0xff] %v621
        %626 = vst.msk [vmem:[%s290 + $0x8] sm:$0xff] %vm420, %v622
        %627 = vst [vmem:[%s290 + $0x10] sm:$0xff] %v623
        %628 = vst.msk [vmem:[%s290 + $0x18] sm:$0xff] %vm420, %v624
      $region40: #{cross_attention_salsa.6} parent=31 // pred_fallthru
        _
      %s629 = smul.u32 2, %s20
      %p630 = scmp.lt.s32.totalorder %s19, 1
      %s631 = scalar_select %p630, %s19, 1
      %p632 = scmp.lt.s32.totalorder %s629, 1
      %s633 = scalar_select %p632, %s629, 1
      %s634 = smul.addr %s633, 2
      %s635 = smul.addr %s631, 4
      %s636 = sadd.s32 %s634, %s635
      %s637 = smul.addr %s636, 8
      %s638 = scalar_lea.vmem %s3, %s637
      // Predicated region
      $region41: #{cross_attention_salsa.6} parent=31 // pred_check
        %p639 = pneg %p137
      $region42: #{cross_attention_salsa.6} parent=31 // pred_check_branch
        %641 = sbr.rel (%p639) target = $region44
      $region43: #{cross_attention_salsa.6} parent=31 // pred_region
        %s642 = smul.u32 2, %s20
      $region44: #{cross_attention_salsa.6} parent=31 // pred_fallthru
        _
    $region32: #{cross_attention_salsa.6} parent=5 // pred_fallthru
      _
    %p643 = scmp.le.s32.totalorder 2, %s9
    // Predicated region
    $region45: #{cross_attention_salsa.6} parent=5 // pred_check
      %p644 = pneg %p643
    $region46: #{cross_attention_salsa.6} parent=5 // pred_check_branch
      %646 = sbr.rel (%p644) target = $region48
    $region47: #{cross_attention_salsa.6} parent=5 // pred_region
      %s647 = ssub.s32 %s9, 2
      // Predicated region
      $region49: #{cross_attention_salsa.6} parent=47 // pred_check
        %p648 = pneg %p143
      $region50: #{cross_attention_salsa.6} parent=47 // pred_check_branch
        %650 = sbr.rel (%p648) target = $region52
      $region51: #{cross_attention_salsa.6} parent=47 // pred_region
        %s651 = smul.u32 2, %s23
        %p652 = scmp.lt.s32.totalorder %s22, 1
        %s653 = scalar_select %p652, %s22, 1
        %p654 = scmp.lt.s32.totalorder %s651, 1
        %s655 = scalar_select %p654, %s651, 1
        %s656 = smul.addr %s655, 2
        %s657 = smul.addr %s653, 4
        %s658 = sadd.s32 %s656, %s657
        %s659 = smul.addr %s658, 8
        %s660 = scalar_lea.vmem %s3, %s659
      $region52: #{cross_attention_salsa.6} parent=47 // pred_fallthru
        _
    $region48: #{cross_attention_salsa.6} parent=5 // pred_fallthru
      _
  $region6: #{cross_attention_salsa.6} parent=0 // loop_footer
    %s13 = sadd.s32 1, %s9
  $region7: #{cross_attention_salsa.6} parent=0 // loop_footer_branch
    %8 = sbr.rel target = $region3
  $region8: #{cross_attention_salsa.6} parent=0 // loop_exit
    _

// kernel: cross_attention_salsa.7
$region0: #{cross_attention_salsa.7}
  #allocation0 [shape = 'u32[]', space=smem, size = 0x4, offset = 0x4, fixed_abs, tag = 'smem constant byte address 0x4 - core index']
  #allocation1 [shape = 'u32[72,128]{1,0:T(1,128)}', space=vmem, size = 0x9000, scoped, tag = 'internal scratch']
  %s0 = inlined_call_operand.vmem [shape: f32[2,4,256], index: 0, kind: input, shape index: {}]
  %s1 = inlined_call_operand.vmem [shape: f32[1,256], index: 1, kind: input, shape index: {}]
  %s2 = inlined_call_operand.vmem [shape: f32[8,4], index: 2, kind: input, shape index: {}]
  %s3 = inlined_call_operand.vmem [shape: f32[8,1], index: 3, kind: input, shape index: {}]
  %s4 = inlined_call_operand.vmem [shape: f32[2,8,256], index: 4, kind: input, shape index: {}]
  %s5 = inlined_call_operand.vmem [shape: f32[2,8,256], index: 5, kind: output, shape index: {}]
  %s6 = sld [smem:[#allocation0]]
  $region53: #{cross_attention_salsa.7} parent=0
    _
  %s8 = ssub.s32 1, %s6
  %s9 = scalar_select 0, %s8, %s6
  loop: start=0, step=1, limit=4
  $region2: #{cross_attention_salsa.7} parent=0 // loop_pre_header
    _
  $region3: #{cross_attention_salsa.7} parent=0 // loop_header
    %s11 = sphi 0, %s15
    %p12 = scmp.ge.s32.totalorder %s11, 4
    %s18 = sphi 0, %s30
    %s19 = sphi 0, %s26
    %s20 = sphi 0, %s18
    %s21 = sphi 0, %s19
    %s22 = sphi 0, %s20
    %s23 = sphi 0, %s21
    %s35 = sphi 0, %s37
    %s38 = sphi 0, %s35
    %s39 = sphi 0, %s38
    %s55 = sphi 0, %s39
    %s61 = sphi 0, %s63
    %s64 = sphi 0, %s61
    %s65 = sphi 0, %s64
    %s81 = sphi 0, %s65
    %s85 = sphi 0, %s85
    %s87 = sphi 0, %s85
    %s88 = sphi 0, %s87
    %s102 = sphi 0, %s88
    %s106 = sphi 0, %s106
    %s108 = sphi 0, %s106
    %s109 = sphi 0, %s108
    %s123 = sphi 0, %s109
    %s131 = sphi 0, %s133
    %s134 = sphi 0, %s131
    %s135 = sphi 0, %s134
    %s151 = sphi 0, %s135
    %s159 = sphi 0, %s161
    %s162 = sphi 0, %s159
    %s163 = sphi 0, %s162
    %s179 = sphi 0, %s163
  $region4: #{cross_attention_salsa.7} parent=0 // loop_header_branch
    %14 = sbr.rel (%p12) target = $region8
  $region5: #{cross_attention_salsa.7} parent=0 // loop_body
    %s16 = ssub.s32 %s11, 1
    %s17 = ssub.s32 %s11, 2
    %s24 = sadd.s32 1, %s19
    %p25 = scmp.ge.s32.totalorder %s24, 1
    %s26 = scalar_select %p25, 0, %s24
    %s27 = sadd.s32 1, %s18
    %s28 = scalar_select %p25, %s27, %s18
    %p29 = scmp.ge.s32.totalorder %s28, 2
    %s30 = scalar_select %p29, 0, %s28
    %s31 = ssub.s32 %s18, %s30
    %s32 = ssub.s32 %s19, %s26
    %s33 = sor.u32 %s31, %s32
    %p34 = scmp.eq.s32.totalorder %s33, 0
    %s36 = sadd.s32 %s35, 1
    %s37 = scalar_select %p34, %s35, %s36
    %p40 = pneg %p34
    %p41 = scmp.eq.s32.totalorder %s11, 1
    %p42 = por %p40, %p41
    %p43 = scmp.ne.s32.totalorder %s35, %s38
    %p44 = scmp.eq.s32.totalorder %s11, 0
    %p45 = por %p43, %p44
    %p46 = scmp.ne.s32.totalorder %s35, %s38
    %p47 = scmp.eq.s32.totalorder %s16, 1
    %p48 = por %p46, %p47
    %p49 = scmp.ne.s32.totalorder %s38, %s39
    %p50 = scmp.eq.s32.totalorder %s16, 0
    %p51 = por %p49, %p50
    %p52 = scmp.ne.s32.totalorder %s38, %s39
    %p53 = scmp.eq.s32.totalorder %s17, 1
    %p54 = por %p52, %p53
    %p56 = scmp.ne.s32.totalorder %s39, %s55
    %p57 = scmp.eq.s32.totalorder %s17, 0
    %p58 = por %p56, %p57
    %s59 = ssub.s32 %s19, %s26
    %p60 = scmp.eq.s32.totalorder %s59, 0
    %s62 = sadd.s32 %s61, 1
    %s63 = scalar_select %p60, %s61, %s62
    %p66 = pneg %p60
    %p67 = scmp.eq.s32.totalorder %s11, 1
    %p68 = por %p66, %p67
    %p69 = scmp.ne.s32.totalorder %s61, %s64
    %p70 = scmp.eq.s32.totalorder %s11, 0
    %p71 = por %p69, %p70
    %p72 = scmp.ne.s32.totalorder %s61, %s64
    %p73 = scmp.eq.s32.totalorder %s16, 1
    %p74 = por %p72, %p73
    %p75 = scmp.ne.s32.totalorder %s64, %s65
    %p76 = scmp.eq.s32.totalorder %s16, 0
    %p77 = por %p75, %p76
    %p78 = scmp.ne.s32.totalorder %s64, %s65
    %p79 = scmp.eq.s32.totalorder %s17, 1
    %p80 = por %p78, %p79
    %p82 = scmp.ne.s32.totalorder %s65, %s81
    %p83 = scmp.eq.s32.totalorder %s17, 0
    %p84 = por %p82, %p83
    %s86 = sadd.s32 %s85, 1
    %p89 = scmp.eq.s32.totalorder %s11, 1
    %p90 = scmp.ne.s32.totalorder %s85, %s87
    %p91 = scmp.eq.s32.totalorder %s11, 0
    %p92 = por %p90, %p91
    %p93 = scmp.ne.s32.totalorder %s85, %s87
    %p94 = scmp.eq.s32.totalorder %s16, 1
    %p95 = por %p93, %p94
    %p96 = scmp.ne.s32.totalorder %s87, %s88
    %p97 = scmp.eq.s32.totalorder %s16, 0
    %p98 = por %p96, %p97
    %p99 = scmp.ne.s32.totalorder %s87, %s88
    %p100 = scmp.eq.s32.totalorder %s17, 1
    %p101 = por %p99, %p100
    %p103 = scmp.ne.s32.totalorder %s88, %s102
    %p104 = scmp.eq.s32.totalorder %s17, 0
    %p105 = por %p103, %p104
    %s107 = sadd.s32 %s106, 1
    %p110 = scmp.eq.s32.totalorder %s11, 1
    %p111 = scmp.ne.s32.totalorder %s106, %s108
    %p112 = scmp.eq.s32.totalorder %s11, 0
    %p113 = por %p111, %p112
    %p114 = scmp.ne.s32.totalorder %s106, %s108
    %p115 = scmp.eq.s32.totalorder %s16, 1
    %p116 = por %p114, %p115
    %p117 = scmp.ne.s32.totalorder %s108, %s109
    %p118 = scmp.eq.s32.totalorder %s16, 0
    %p119 = por %p117, %p118
    %p120 = scmp.ne.s32.totalorder %s108, %s109
    %p121 = scmp.eq.s32.totalorder %s17, 1
    %p122 = por %p120, %p121
    %p124 = scmp.ne.s32.totalorder %s109, %s123
    %p125 = scmp.eq.s32.totalorder %s17, 0
    %p126 = por %p124, %p125
    %s127 = ssub.s32 %s18, %s30
    %s128 = ssub.s32 %s19, %s26
    %s129 = sor.u32 %s127, %s128
    %p130 = scmp.eq.s32.totalorder %s129, 0
    %s132 = sadd.s32 %s131, 1
    %s133 = scalar_select %p130, %s131, %s132
    %p136 = pneg %p130
    %p137 = scmp.eq.s32.totalorder %s11, 1
    %p138 = por %p136, %p137
    %p139 = scmp.ne.s32.totalorder %s131, %s134
    %p140 = scmp.eq.s32.totalorder %s11, 0
    %p141 = por %p139, %p140
    %p142 = scmp.ne.s32.totalorder %s131, %s134
    %p143 = scmp.eq.s32.totalorder %s16, 1
    %p144 = por %p142, %p143
    %p145 = scmp.ne.s32.totalorder %s134, %s135
    %p146 = scmp.eq.s32.totalorder %s16, 0
    %p147 = por %p145, %p146
    %p148 = scmp.ne.s32.totalorder %s134, %s135
    %p149 = scmp.eq.s32.totalorder %s17, 1
    %p150 = por %p148, %p149
    %p152 = scmp.ne.s32.totalorder %s135, %s151
    %p153 = scmp.eq.s32.totalorder %s17, 0
    %p154 = por %p152, %p153
    %s155 = ssub.s32 %s18, %s30
    %s156 = ssub.s32 %s19, %s26
    %s157 = sor.u32 %s155, %s156
    %p158 = scmp.eq.s32.totalorder %s157, 0
    %s160 = sadd.s32 %s159, 1
    %s161 = scalar_select %p158, %s159, %s160
    %p164 = pneg %p158
    %p165 = scmp.eq.s32.totalorder %s11, 1
    %p166 = por %p164, %p165
    %p167 = scmp.ne.s32.totalorder %s159, %s162
    %p168 = scmp.eq.s32.totalorder %s11, 0
    %p169 = por %p167, %p168
    %p170 = scmp.ne.s32.totalorder %s159, %s162
    %p171 = scmp.eq.s32.totalorder %s16, 1
    %p172 = por %p170, %p171
    %p173 = scmp.ne.s32.totalorder %s162, %s163
    %p174 = scmp.eq.s32.totalorder %s16, 0
    %p175 = por %p173, %p174
    %p176 = scmp.ne.s32.totalorder %s162, %s163
    %p177 = scmp.eq.s32.totalorder %s17, 1
    %p178 = por %p176, %p177
    %p180 = scmp.ne.s32.totalorder %s163, %s179
    %p181 = scmp.eq.s32.totalorder %s17, 0
    %p182 = por %p180, %p181
    %p183 = scmp.le.s32.totalorder 1, %s11
    %p184 = scmp.lt.s32.totalorder %s11, 3
    %p185 = pnand %p183, %p184
    %p186 = pneg %p185
    // Predicated region
    $region9: #{cross_attention_salsa.7} parent=5 // pred_check
      _
    $region10: #{cross_attention_salsa.7} parent=5 // pred_check_branch
      %188 = sbr.rel (%p185) target = $region12
    $region11: #{cross_attention_salsa.7} parent=5 // pred_region
      %s189 = ssub.s32 %s11, 1
      // Predicated region
      $region13: #{cross_attention_salsa.7} parent=11 // pred_check
        %p190 = pneg %p77
      $region14: #{cross_attention_salsa.7} parent=11 // pred_check_branch
        %192 = sbr.rel (%p190) target = $region16
      $region15: #{cross_attention_salsa.7} parent=11 // pred_region
        %s193 = smul.u32 2, %s21
        %p194 = scmp.lt.s32.totalorder %s193, 1
        %s195 = scalar_select %p194, %s193, 1
        %s196 = scalar_lea.vmem %s1, %s195
        %s197 = smul.u32 2, %s21
      $region16: #{cross_attention_salsa.7} parent=11 // pred_fallthru
        _
      // Predicated region
      $region17: #{cross_attention_salsa.7} parent=11 // pred_check
        %p198 = pneg %p98
      $region18: #{cross_attention_salsa.7} parent=11 // pred_check_branch
        %200 = sbr.rel (%p198) target = $region20
      $region19: #{cross_attention_salsa.7} parent=11 // pred_region
        _
      $region20: #{cross_attention_salsa.7} parent=11 // pred_fallthru
        _
      // Predicated region
      $region21: #{cross_attention_salsa.7} parent=11 // pred_check
        %p201 = pneg %p119
      $region22: #{cross_attention_salsa.7} parent=11 // pred_check_branch
        %203 = sbr.rel (%p201) target = $region24
      $region23: #{cross_attention_salsa.7} parent=11 // pred_region
        _
      $region24: #{cross_attention_salsa.7} parent=11 // pred_fallthru
        _
    $region12: #{cross_attention_salsa.7} parent=5 // pred_fallthru
      _
    %p204 = scmp.lt.s32.totalorder %s11, 2
    // Predicated region
    $region25: #{cross_attention_salsa.7} parent=5 // pred_check
      %p205 = pneg %p204
    $region26: #{cross_attention_salsa.7} parent=5 // pred_check_branch
      %207 = sbr.rel (%p205) target = $region28
    $region27: #{cross_attention_salsa.7} parent=5 // pred_region
      // Predicated region
      $region29: #{cross_attention_salsa.7} parent=27 // pred_check
        %p208 = pneg %p45
      $region30: #{cross_attention_salsa.7} parent=27 // pred_check_branch
        %210 = sbr.rel (%p208) target = $region32
      $region31: #{cross_attention_salsa.7} parent=27 // pred_region
        %s211 = smul.u32 2, %s19
        %p212 = scmp.lt.s32.totalorder %s18, 1
        %s213 = scalar_select %p212, %s18, 1
        %p214 = scmp.lt.s32.totalorder %s211, 1
        %s215 = scalar_select %p214, %s211, 1
        %s216 = smul.addr %s213, 2
        %s217 = sadd.s32 %s215, %s216
        %s218 = smul.addr %s217, 4
        %s219 = scalar_lea.vmem %s0, %s218
        %s220 = smul.u32 2, %s19
      $region32: #{cross_attention_salsa.7} parent=27 // pred_fallthru
        _
      // Predicated region
      $region33: #{cross_attention_salsa.7} parent=27 // pred_check
        %p221 = pneg %p141
      $region34: #{cross_attention_salsa.7} parent=27 // pred_check_branch
        %223 = sbr.rel (%p221) target = $region36
      $region35: #{cross_attention_salsa.7} parent=27 // pred_region
        %s224 = smul.u32 2, %s19
        %p225 = scmp.lt.s32.totalorder %s18, 1
        %s226 = scalar_select %p225, %s18, 1
        %p227 = scmp.lt.s32.totalorder %s224, 1
        %s228 = scalar_select %p227, %s224, 1
        %s229 = smul.addr %s226, 2
        %s230 = sadd.s32 %s228, %s229
        %s231 = smul.addr %s230, 8
        %s232 = scalar_lea.vmem %s4, %s231
        %s233 = smul.u32 2, %s19
      $region36: #{cross_attention_salsa.7} parent=27 // pred_fallthru
        _
    $region28: #{cross_attention_salsa.7} parent=5 // pred_fallthru
      _
    %p234 = scmp.le.s32.totalorder 1, %s11
    %p235 = scmp.lt.s32.totalorder %s11, 3
    %p236 = pnand %p234, %p235
    %p237 = pneg %p236
    // Predicated region
    $region37: #{cross_attention_salsa.7} parent=5 // pred_check
      _
    $region38: #{cross_attention_salsa.7} parent=5 // pred_check_branch
      %239 = sbr.rel (%p236) target = $region40
    $region39: #{cross_attention_salsa.7} parent=5 // pred_region
      %s240 = ssub.s32 %s11, 1
      %s241 = smul.u32 2, %s21
      %p242 = scmp.lt.s32.totalorder %s20, 1
      %s243 = scalar_select %p242, %s20, 1
      %p244 = scmp.lt.s32.totalorder %s241, 1
      %s245 = scalar_select %p244, %s241, 1
      %s246 = smul.addr %s243, 2
      %s247 = sadd.s32 %s245, %s246
      %s248 = smul.addr %s247, 4
      %s249 = scalar_lea.vmem %s0, %s248
      %p250 = pneg %p51
      %p251 = pneg %p48
      %s252 = smul.u32 2, %s21
      %p253 = scmp.lt.s32.totalorder %s252, 1
      %s254 = scalar_select %p253, %s252, 1
      %s255 = scalar_lea.vmem %s1, %s254
      %p256 = pneg %p77
      %p257 = pneg %p74
      %p258 = pneg %p98
      %p259 = pneg %p95
      %p260 = pneg %p119
      %p261 = pneg %p116
      %s262 = smul.u32 2, %s21
      %p263 = scmp.lt.s32.totalorder %s20, 1
      %s264 = scalar_select %p263, %s20, 1
      %p265 = scmp.lt.s32.totalorder %s262, 1
      %s266 = scalar_select %p265, %s262, 1
      %s267 = smul.addr %s264, 2
      %s268 = sadd.s32 %s266, %s267
      %s269 = smul.addr %s268, 8
      %s270 = scalar_lea.vmem %s4, %s269
      %p271 = pneg %p147
      %p272 = pneg %p144
      %p273 = pneg %p175
      %p274 = pneg %p172
      %s275 = smul.u32 2, %s21
      %p276 = scmp.lt.s32.totalorder %s20, 1
      %s277 = scalar_select %p276, %s20, 1
      %p278 = scmp.lt.s32.totalorder %s275, 1
      %s279 = scalar_select %p278, %s275, 1
      %s280 = smul.addr %s277, 2
      %s281 = sadd.s32 %s279, %s280
      %s282 = smul.addr %s281, 8
      %s283 = scalar_lea.vmem %s5, %s282
      %s284 = smul.u32 2, %s21
      %p285 = scmp.lt.s32.totalorder %s20, 1
      %s286 = scalar_select %p285, %s20, 1
      %p287 = scmp.lt.s32.totalorder %s284, 1
      %s288 = scalar_select %p287, %s284, 1
      %s289 = smul.addr %s286, 2
      %s290 = sadd.s32 %s288, %s289
      %s291 = smul.addr %s290, 4
      %s292 = scalar_lea.vmem %s0, %s291
      %s293 = smul.u32 2, %s21
      %s294 = smul.u32 2, %s21
      %p295 = scmp.lt.s32.totalorder %s294, 1
      %s296 = scalar_select %p295, %s294, 1
      %s297 = scalar_lea.vmem %s1, %s296
      %s298 = smul.u32 2, %s21
      %s299 = smul.u32 2, %s21
      %p300 = scmp.lt.s32.totalorder %s20, 1
      %s301 = scalar_select %p300, %s20, 1
      %p302 = scmp.lt.s32.totalorder %s299, 1
      %s303 = scalar_select %p302, %s299, 1
      %s304 = smul.addr %s301, 2
      %s305 = sadd.s32 %s303, %s304
      %s306 = smul.addr %s305, 8
      %s307 = scalar_lea.vmem %s4, %s306
      %s308 = smul.u32 2, %s21
      %s309 = smul.u32 2, %s21
      %p310 = scmp.lt.s32.totalorder %s20, 1
      %s311 = scalar_select %p310, %s20, 1
      %p312 = scmp.lt.s32.totalorder %s309, 1
      %s313 = scalar_select %p312, %s309, 1
      %s314 = smul.addr %s311, 2
      %s315 = sadd.s32 %s313, %s314
      %s316 = smul.addr %s315, 8
      %s317 = scalar_lea.vmem %s5, %s316
      %s318 = smul.u32 2, %s21
      %v319 = vld [vmem:[%s292] sm:$0xff]
      %v320 = vld [vmem:[%s297] sm:$0x3]
      %v322 = vperm.slane %v320, 0
      %v323 = vperm.slane %v320, 1
      %v324 = vrot.slane %v323, 4
      %vm325 = vcmask 1043456
      %v326 = vsel %vm325, %v322, %v324
      %v328 = vmul.f32 %v319, %v326
      %v329 = vld [vmem:[%s2] sm:$0xff]
      %v330 = vld [vmem:[%s3] sm:$0xff]
      %332 = vset.pattern.permute.xlu0 0
      %333 = vperm.xlu0 %332, %v330
      %v334 = vpop.permute.xlu0 %333
      %337 = vst [vmem:[#allocation1] ss:$2 sm:$0xff] %v328
      %v338 = vld.sshfl [vmem:[#allocation1] sm:$0xff pattern:$0x75316420]
      %v339 = vld.sshfl [vmem:[#allocation1 + $0x8] sm:$0xff pattern:$0x75316420]
      %vm340 = vcmask 31744
      %v342 = vsel %vm340, %v329, 0
      %v344 = vsel %vm325, %v338, 0
      %v346 = vsel %vm325, %v339, 0
      %348 = vmatpush.msra.mxu0 0.0
      %349 = vmatpush.msra.mxu0 0.0
      %350 = vmatpush.msra.mxu0 0.0
      %351 = vmatpush.msra.mxu0 0.0
      %352 = vmatpush.msra.mxu0 0.0
      %353 = vmatpush.msra.mxu0 0.0
      %354 = vmatpush.msra.mxu0 0.0
      %355 = vmatpush.msra.mxu0 0.0
      %356 = vmatpush.msra.mxu0 0.0
      %357 = vmatpush.msra.mxu0 0.0
      %358 = vmatpush.msra.mxu0 0.0
      %359 = vmatpush.msra.mxu0 0.0
      %360 = vmatpush.msra.mxu0 0.0
      %361 = vmatpush.msra.mxu0 0.0
      %362 = vmatpush.msra.mxu0 0.0
      %363 = vmatpush.msra.mxu0 %v344
      %364 = vmatmul.f32.gmra.mxu0 %v342
      %v365 = vpop.f32.mrf.mxu0
      %v366 = vadd.f32 %v334, %v365
      %367 = vdwg.mxu0
      %368 = vmatpush.msra.mxu0 0.0
      %369 = vmatpush.msra.mxu0 0.0
      %370 = vmatpush.msra.mxu0 0.0
      %371 = vmatpush.msra.mxu0 0.0
      %372 = vmatpush.msra.mxu0 0.0
      %373 = vmatpush.msra.mxu0 0.0
      %374 = vmatpush.msra.mxu0 0.0
      %375 = vmatpush.msra.mxu0 0.0
      %376 = vmatpush.msra.mxu0 0.0
      %377 = vmatpush.msra.mxu0 0.0
      %378 = vmatpush.msra.mxu0 0.0
      %379 = vmatpush.msra.mxu0 0.0
      %380 = vmatpush.msra.mxu0 0.0
      %381 = vmatpush.msra.mxu0 0.0
      %382 = vmatpush.msra.mxu0 0.0
      %383 = vmatpush.msra.mxu0 %v346
      %384 = vmatmul.f32.gmra.mxu0 %v342
      %v385 = vpop.f32.mrf.mxu0
      %v386 = vadd.f32 %v334, %v385
      %387 = vdwg.mxu0
      %v388 = vld [vmem:[%s307] sm:$0xff]
      %v389 = vld [vmem:[%s307 + $0x8] sm:$0xff]
      %v390 = vadd.f32 %v388, %v366
      %v391 = vadd.f32 %v389, %v386
      %392 = vst [vmem:[%s317] sm:$0xff] %v390
      %393 = vst [vmem:[%s317 + $0x8] sm:$0xff] %v391
      %s394 = smul.u32 2, %s21
      %p395 = scmp.lt.s32.totalorder %s20, 1
      %s396 = scalar_select %p395, %s20, 1
      %p397 = scmp.lt.s32.totalorder %s394, 1
      %s398 = scalar_select %p397, %s394, 1
      %s399 = smul.addr %s396, 2
      %s400 = sadd.s32 %s398, %s399
      %s401 = smul.addr %s400, 8
      %s402 = scalar_lea.vmem %s5, %s401
      // Predicated region
      $region41: #{cross_attention_salsa.7} parent=39 // pred_check
        %p403 = pneg %p172
      $region42: #{cross_attention_salsa.7} parent=39 // pred_check_branch
        %405 = sbr.rel (%p403) target = $region44
      $region43: #{cross_attention_salsa.7} parent=39 // pred_region
        %s406 = smul.u32 2, %s21
      $region44: #{cross_attention_salsa.7} parent=39 // pred_fallthru
        _
    $region40: #{cross_attention_salsa.7} parent=5 // pred_fallthru
      _
    %p407 = scmp.le.s32.totalorder 2, %s11
    // Predicated region
    $region45: #{cross_attention_salsa.7} parent=5 // pred_check
      %p408 = pneg %p407
    $region46: #{cross_attention_salsa.7} parent=5 // pred_check_branch
      %410 = sbr.rel (%p408) target = $region48
    $region47: #{cross_attention_salsa.7} parent=5 // pred_region
      %s411 = ssub.s32 %s11, 2
      // Predicated region
      $region49: #{cross_attention_salsa.7} parent=47 // pred_check
        %p412 = pneg %p178
      $region50: #{cross_attention_salsa.7} parent=47 // pred_check_branch
        %414 = sbr.rel (%p412) target = $region52
      $region51: #{cross_attention_salsa.7} parent=47 // pred_region
        %s415 = smul.u32 2, %s23
        %p416 = scmp.lt.s32.totalorder %s22, 1
        %s417 = scalar_select %p416, %s22, 1
        %p418 = scmp.lt.s32.totalorder %s415, 1
        %s419 = scalar_select %p418, %s415, 1
        %s420 = smul.addr %s417, 2
        %s421 = sadd.s32 %s419, %s420
        %s422 = smul.addr %s421, 8
        %s423 = scalar_lea.vmem %s5, %s422
      $region52: #{cross_attention_salsa.7} parent=47 // pred_fallthru
        _
    $region48: #{cross_attention_salsa.7} parent=5 // pred_fallthru
      _
  $region6: #{cross_attention_salsa.7} parent=0 // loop_footer
    %s15 = sadd.s32 1, %s11
  $region7: #{cross_attention_salsa.7} parent=0 // loop_footer_branch
    %10 = sbr.rel target = $region3
  $region8: #{cross_attention_salsa.7} parent=0 // loop_exit
    _

</llo_original>
